<compile_context>
chip_gen: v6e
topology: v6e:2x2x1
jax: 0.10.0
libtpu: 0.0.40
codegen_flags: <defaults>
</compile_context>

<pallas_src>
import functools
import math

import jax
import jax.numpy as jnp
from jax.experimental import pallas as pl
from jax.experimental.pallas import tpu as pltpu


MATMUL_DTYPE = jnp.bfloat16   # MXU input dtype; accumulation/epilogue remain f32.


def _round_up(x, m):
    return (x + m - 1) // m * m


# ----------------------------------------------------------------------------- kernels

def conv_pool_relu_kernel(cout, p_ref, w_ref, b_ref, o_ref):
    """Fused Conv2d(3x3) -> MaxPool2d(2) -> ReLU for one tile of pooled positions.

    p_ref: (TM, 4*K)      4 pooling candidates concatenated along the K axis (bf16)
    w_ref: (4*K, 4*cout)  block-diagonal im2col conv weight (bf16)
    b_ref: (1, cout)      conv bias (f32)
    o_ref: (TM, cout)     relu(maxpool(conv(x))) (f32)
    """
    # One long-K, lane-dense matmul produces all 4 pool candidates at once.
    y = jnp.dot(p_ref[...], w_ref[...], preferred_element_type=jnp.float32)
    # Max over the 4 static lane-groups of `cout` columns, then bias once, then ReLU.
    m01 = jnp.maximum(y[:, 0 * cout:1 * cout], y[:, 1 * cout:2 * cout])
    m23 = jnp.maximum(y[:, 2 * cout:3 * cout], y[:, 3 * cout:4 * cout])
    m = jnp.maximum(m01, m23)
    o_ref[...] = jnp.maximum(m + b_ref[...], 0.0)


def mlp_softmax_kernel(x_ref, w1_ref, b1_ref, w2_ref, b2_ref, o_ref):
    """relu(x @ W1 + b1) @ W2 + b2, then Softmax over the last axis (dim=1)."""
    h = jnp.dot(x_ref[...], w1_ref[...], preferred_element_type=jnp.float32) + b1_ref[...]
    h = jnp.maximum(h, 0.0)
    logits = jnp.dot(h.astype(w2_ref.dtype), w2_ref[...],
                     preferred_element_type=jnp.float32) + b2_ref[...]
    z = logits - jnp.max(logits, axis=1, keepdims=True)
    e = jnp.exp(z)
    inv = pl.reciprocal(jnp.sum(e, axis=1, keepdims=True), approx=False)
    o_ref[...] = e * inv


# ----------------------------------------------------------------------------- wrappers

def conv_pool_relu(patches, w_big, b, cout, *, tm=1024):
    """patches: (M, 4*K) bf16; w_big: (4*K, 4*cout) bf16; b: (1, cout) f32 -> (M, cout) f32."""
    M, K4 = patches.shape
    TM = min(tm, _round_up(M, 8))             # tile rows: multiple of 8, <= 1024
    Mp = _round_up(M, TM)
    if Mp != M:
        patches = jnp.pad(patches, ((0, Mp - M), (0, 0)))
    out = pl.pallas_call(
        functools.partial(conv_pool_relu_kernel, cout),
        grid=(Mp // TM,),
        out_shape=jax.ShapeDtypeStruct((Mp, cout), jnp.float32),
        in_specs=[
            pl.BlockSpec((TM, K4), lambda i: (i, 0)),          # pipelined activation tile
            pl.BlockSpec((K4, 4 * cout), lambda i: (0, 0)),    # weight resident in VMEM
            pl.BlockSpec((1, cout), lambda i: (0, 0)),         # bias resident in VMEM
        ],
        out_specs=pl.BlockSpec((TM, cout), lambda i: (i, 0)),
        compiler_params=pltpu.CompilerParams(dimension_semantics=("parallel",)),
    )(patches, w_big, b)
    return out[:M] if Mp != M else out


def mlp_softmax(x, w1, b1, w2, b2, *, tn=512):
    """x: (N, 800) bf16; weights bf16; biases f32 -> softmax probs (N, 10) f32."""
    N, D = x.shape
    C = w2.shape[1]
    TN = min(tn, _round_up(N, 8))
    Np = _round_up(N, TN)
    if Np != N:
        x = jnp.pad(x, ((0, Np - N), (0, 0)))
    out = pl.pallas_call(
        mlp_softmax_kernel,
        grid=(Np // TN,),
        out_shape=jax.ShapeDtypeStruct((Np, C), jnp.float32),
        in_specs=[
            pl.BlockSpec((TN, D), lambda i: (i, 0)),           # pipelined activation tile
            pl.BlockSpec(w1.shape, lambda i: (0, 0)),          # W1 resident
            pl.BlockSpec(b1.shape, lambda i: (0, 0)),
            pl.BlockSpec(w2.shape, lambda i: (0, 0)),          # W2 resident
            pl.BlockSpec(b2.shape, lambda i: (0, 0)),
        ],
        out_specs=pl.BlockSpec((TN, C), lambda i: (i, 0)),
        compiler_params=pltpu.CompilerParams(dimension_semantics=("parallel",)),
    )(x, w1, b1, w2, b2)
    return out[:N] if Np != N else out


# ----------------------------------------------------------------------------- host glue

def im2col_pooled_merged(x_nhwc, Hc, Wc, dtype):
    """Build merged im2col patches for 3x3 conv + MaxPool2d(2).

    x_nhwc: (N, H, W, C). Hc, Wc: conv output dims (H-2, W-2); pooled dims Hc//2, Wc//2.
    Returns (N*Hp*Wp, 4*C*9): the 4 pooling candidates concatenated along the K axis,
    each K block ordered c*9 + ky*3 + kx (matches torch conv-weight flatten).
    """
    N, H, W, C = x_nhwc.shape
    Hp, Wp = Hc // 2, Wc // 2
    K = C * 9
    cands = []
    for di in range(2):
        for dj in range(2):
            taps = []
            for ky in range(3):
                for kx in range(3):
                    sl = x_nhwc[:, di + ky: di + ky + 2 * Hp: 2,
                                   dj + kx: dj + kx + 2 * Wp: 2, :]   # (N, Hp, Wp, C)
                    taps.append(sl)
            t = jnp.stack(taps, axis=-1)              # (N, Hp, Wp, C, 9)
            cands.append(t.reshape(N * Hp * Wp, K))   # K index = c*9 + ky*3 + kx
    return jnp.concatenate(cands, axis=1).astype(dtype)   # (M, 4*K)


def init_params(key):
    """Deterministic params with PyTorch-default-like uniform(-1/sqrt(fan_in), ...)."""
    ks = jax.random.split(key, 8)
    u = lambda k, shape, bnd: jax.random.uniform(k, shape, jnp.float32, -bnd, bnd)
    p = {}
    b = 1.0 / math.sqrt(1 * 3 * 3)
    p["w_conv1"] = u(ks[0], (16, 1, 3, 3), b)
    p["b_conv1"] = u(ks[1], (16,), b)
    b = 1.0 / math.sqrt(16 * 3 * 3)
    p["w_conv2"] = u(ks[2], (32, 16, 3, 3), b)
    p["b_conv2"] = u(ks[3], (32,), b)
    b = 1.0 / math.sqrt(800)
    p["w_fc1"] = u(ks[4], (100, 800), b)
    p["b_fc1"] = u(ks[5], (100,), b)
    b = 1.0 / math.sqrt(100)
    p["w_fc2"] = u(ks[6], (10, 100), b)
    p["b_fc2"] = u(ks[7], (10,), b)
    return p


def prepare_kernel_params(params, dtype=MATMUL_DTYPE):
    """One-time weight preprocessing into kernel-ready layouts (off the hot path)."""
    kp = {}
    # conv1: im2col (9, 16) -> block-diag (36, 64) for the 4 merged pool candidates.
    w = jnp.transpose(params["w_conv1"].reshape(16, 9))                  # (9, 16)
    kp["w_conv1"] = jnp.kron(jnp.eye(4, dtype=w.dtype), w).astype(dtype)  # (36, 64)
    kp["b_conv1"] = params["b_conv1"].reshape(1, 16).astype(jnp.float32)
    # conv2: im2col (144, 32) -> block-diag (576, 128).
    w = jnp.transpose(params["w_conv2"].reshape(32, 144))                # (144, 32)
    kp["w_conv2"] = jnp.kron(jnp.eye(4, dtype=w.dtype), w).astype(dtype)  # (576, 128)
    kp["b_conv2"] = params["b_conv2"].reshape(1, 32).astype(jnp.float32)
    # fc1: fold the PyTorch NCHW view(-1, 800) flatten permutation into the weight,
    # so the kernel can consume the NHWC flatten of y2 directly.
    wf1 = params["w_fc1"].reshape(100, 32, 5, 5)                         # (out, c, h, w)
    wf1 = jnp.transpose(wf1, (0, 2, 3, 1)).reshape(100, 800)             # cols -> (h, w, c)
    kp["w_fc1"] = jnp.transpose(wf1).astype(dtype)                       # (800, 100)
    kp["b_fc1"] = params["b_fc1"].reshape(1, 100).astype(jnp.float32)
    kp["w_fc2"] = jnp.transpose(params["w_fc2"]).astype(dtype)           # (100, 10)
    kp["b_fc2"] = params["b_fc2"].reshape(1, 10).astype(jnp.float32)
    return kp


def cnn_forward(kp, x_nchw):
    """Matches CNNClassifier.forward (Dropout2d is declared but never used there)."""
    N = x_nchw.shape[0]
    x = jnp.transpose(x_nchw, (0, 2, 3, 1)).astype(jnp.float32)       # NHWC (N, 28, 28, 1)

    # conv1 (1->16, 3x3) -> pool(2) -> relu
    p1 = im2col_pooled_merged(x, 26, 26, MATMUL_DTYPE)                # (N*169, 36)
    y1 = conv_pool_relu(p1, kp["w_conv1"], kp["b_conv1"], 16)         # (N*169, 16) f32
    y1 = y1.reshape(N, 13, 13, 16)

    # conv2 (16->32, 3x3) -> pool(2) -> relu
    p2 = im2col_pooled_merged(y1, 11, 11, MATMUL_DTYPE)               # (N*25, 576)
    y2 = conv_pool_relu(p2, kp["w_conv2"], kp["b_conv2"], 32)         # (N*25, 32) f32

    # NHWC flatten; the NCHW view(-1,800) permutation is folded into w_fc1.
    feat = y2.reshape(N, 800).astype(MATMUL_DTYPE)

    return mlp_softmax(feat, kp["w_fc1"], kp["b_fc1"],
                       kp["w_fc2"], kp["b_fc2"])                      # (N, 10) f32


if __name__ == "__main__":
    key = jax.random.PRNGKey(0)
    k_param, k_x = jax.random.split(key)
    params = init_params(k_param)
    kparams = prepare_kernel_params(params)

    # 28x28 single-channel input is required by the forward pass (view(-1, 800)).
    x = jax.random.normal(k_x, (2, 1, 28, 28), dtype=jnp.float32)

    probs = jax.jit(cnn_forward)(kparams, x)
    probs = jax.block_until_ready(probs)

    assert probs.shape == (2, 10)
    assert bool(jnp.all(jnp.isfinite(probs)))
    # softmax rows sum to 1
    assert bool(jnp.allclose(jnp.sum(probs, axis=1), 1.0, atol=1e-5))
    print("KERNEL_OK")
</pallas_src>

<mosaic_0001>
module attributes {stable_mosaic.version = 11 : i64} {
  func.func @conv_pool_relu_kernel(%arg0: i32, %arg1: memref<344x36xbf16, #tpu.memory_space<vmem>>, %arg2: memref<36x64xbf16, #tpu.memory_space<vmem>>, %arg3: memref<1x16xf32, #tpu.memory_space<vmem>>, %arg4: memref<344x16xf32, #tpu.memory_space<vmem>>) attributes {dimension_semantics = [#tpu.dimension_semantics<parallel>], iteration_bounds = array<i64: 1>, scalar_prefetch = 0 : i64, scratch_operands = 0 : i64, tpu.core_type = #tpu.core_type<tc>, window_params = [{transform_indices = @transform_0, window_bounds = array<i64: 344, 36>}, {pipeline_mode = #tpu.pipeline_mode<synchronous>, transform_indices = @transform_1, window_bounds = array<i64: 36, 64>}, {pipeline_mode = #tpu.pipeline_mode<synchronous>, transform_indices = @transform_2, window_bounds = array<i64: 1, 16>}, {transform_indices = @transform_3, window_bounds = array<i64: 344, 16>}]} {
    %c0 = arith.constant 0 : index
    %c0_0 = arith.constant 0 : index
    %0 = vector.load %arg1[%c0, %c0_0] : memref<344x36xbf16, #tpu.memory_space<vmem>>, vector<344x36xbf16>
    %c0_1 = arith.constant 0 : index
    %c0_2 = arith.constant 0 : index
    %1 = vector.load %arg2[%c0_1, %c0_2] : memref<36x64xbf16, #tpu.memory_space<vmem>>, vector<36x64xbf16>
    %cst = arith.constant dense<0.000000e+00> : vector<344x64xf32>
    %2 = tpu.matmul %0, %1, %cst {dimension_numbers = #tpu.dot_dimension_numbers<[1], [0], [0], [1], [0, 0, 1, 1], [], []>} : vector<344x36xbf16>, vector<36x64xbf16>, vector<344x64xf32> -> vector<344x64xf32>
    %3 = vector.extract_strided_slice %2 {offsets = [0, 0], sizes = [344, 16], strides = [1, 1]} : vector<344x64xf32> to vector<344x16xf32>
    %4 = vector.extract_strided_slice %2 {offsets = [0, 16], sizes = [344, 16], strides = [1, 1]} : vector<344x64xf32> to vector<344x16xf32>
    %5 = arith.maximumf %3, %4 : vector<344x16xf32>
    %6 = vector.extract_strided_slice %2 {offsets = [0, 32], sizes = [344, 16], strides = [1, 1]} : vector<344x64xf32> to vector<344x16xf32>
    %7 = vector.extract_strided_slice %2 {offsets = [0, 48], sizes = [344, 16], strides = [1, 1]} : vector<344x64xf32> to vector<344x16xf32>
    %8 = arith.maximumf %6, %7 : vector<344x16xf32>
    %9 = arith.maximumf %5, %8 : vector<344x16xf32>
    %c0_3 = arith.constant 0 : index
    %c0_4 = arith.constant 0 : index
    %10 = vector.load %arg3[%c0_3, %c0_4] : memref<1x16xf32, #tpu.memory_space<vmem>>, vector<1x16xf32>
    %11 = vector.broadcast %10 : vector<1x16xf32> to vector<344x16xf32>
    %12 = arith.addf %9, %11 : vector<344x16xf32>
    %cst_5 = arith.constant 0.000000e+00 : f32
    %13 = vector.broadcast %cst_5 : f32 to vector<344x16xf32>
    %14 = arith.maximumf %12, %13 : vector<344x16xf32>
    %c0_6 = arith.constant 0 : index
    %c0_7 = arith.constant 0 : index
    %15 = vector.load %arg4[%c0_6, %c0_7] : memref<344x16xf32, #tpu.memory_space<vmem>>, vector<344x16xf32>
    tpu.vector_store %arg4[%c0_6, %c0_7], %14 {strides = array<i32>} : memref<344x16xf32, #tpu.memory_space<vmem>>, vector<344x16xf32>,
    return
  }
  func.func @transform_0(%arg0: i32) -> (i32, i32) {
    %c0_i32 = arith.constant 0 : i32
    %c0_i32_0 = arith.constant 0 : i32
    return %arg0, %c0_i32 : i32, i32
  }
  func.func @transform_1(%arg0: i32) -> (i32, i32) {
    %c0_i32 = arith.constant 0 : i32
    %c0_i32_0 = arith.constant 0 : i32
    %c0_i32_1 = arith.constant 0 : i32
    return %c0_i32, %c0_i32_0 : i32, i32
  }
  func.func @transform_2(%arg0: i32) -> (i32, i32) {
    %c0_i32 = arith.constant 0 : i32
    %c0_i32_0 = arith.constant 0 : i32
    %c0_i32_1 = arith.constant 0 : i32
    return %c0_i32, %c0_i32_0 : i32, i32
  }
  func.func @transform_3(%arg0: i32) -> (i32, i32) {
    %c0_i32 = arith.constant 0 : i32
    %c0_i32_0 = arith.constant 0 : i32
    return %arg0, %c0_i32 : i32, i32
  }
}

module attributes {stable_mosaic.version = 11 : i64} {
  func.func @conv_pool_relu_kernel(%arg0: i32, %arg1: memref<56x576xbf16, #tpu.memory_space<vmem>>, %arg2: memref<576x128xbf16, #tpu.memory_space<vmem>>, %arg3: memref<1x32xf32, #tpu.memory_space<vmem>>, %arg4: memref<56x32xf32, #tpu.memory_space<vmem>>) attributes {dimension_semantics = [#tpu.dimension_semantics<parallel>], iteration_bounds = array<i64: 1>, scalar_prefetch = 0 : i64, scratch_operands = 0 : i64, tpu.core_type = #tpu.core_type<tc>, window_params = [{transform_indices = @transform_0, window_bounds = array<i64: 56, 576>}, {pipeline_mode = #tpu.pipeline_mode<synchronous>, transform_indices = @transform_1, window_bounds = array<i64: 576, 128>}, {pipeline_mode = #tpu.pipeline_mode<synchronous>, transform_indices = @transform_2, window_bounds = array<i64: 1, 32>}, {transform_indices = @transform_3, window_bounds = array<i64: 56, 32>}]} {
    %c0 = arith.constant 0 : index
    %c0_0 = arith.constant 0 : index
    %0 = vector.load %arg1[%c0, %c0_0] : memref<56x576xbf16, #tpu.memory_space<vmem>>, vector<56x576xbf16>
    %c0_1 = arith.constant 0 : index
    %c0_2 = arith.constant 0 : index
    %1 = vector.load %arg2[%c0_1, %c0_2] : memref<576x128xbf16, #tpu.memory_space<vmem>>, vector<576x128xbf16>
    %cst = arith.constant dense<0.000000e+00> : vector<56x128xf32>
    %2 = tpu.matmul %0, %1, %cst {dimension_numbers = #tpu.dot_dimension_numbers<[1], [0], [0], [1], [0, 0, 1, 1], [], []>} : vector<56x576xbf16>, vector<576x128xbf16>, vector<56x128xf32> -> vector<56x128xf32>
    %3 = vector.extract_strided_slice %2 {offsets = [0, 0], sizes = [56, 32], strides = [1, 1]} : vector<56x128xf32> to vector<56x32xf32>
    %4 = vector.extract_strided_slice %2 {offsets = [0, 32], sizes = [56, 32], strides = [1, 1]} : vector<56x128xf32> to vector<56x32xf32>
    %5 = arith.maximumf %3, %4 : vector<56x32xf32>
    %6 = vector.extract_strided_slice %2 {offsets = [0, 64], sizes = [56, 32], strides = [1, 1]} : vector<56x128xf32> to vector<56x32xf32>
    %7 = vector.extract_strided_slice %2 {offsets = [0, 96], sizes = [56, 32], strides = [1, 1]} : vector<56x128xf32> to vector<56x32xf32>
    %8 = arith.maximumf %6, %7 : vector<56x32xf32>
    %9 = arith.maximumf %5, %8 : vector<56x32xf32>
    %c0_3 = arith.constant 0 : index
    %c0_4 = arith.constant 0 : index
    %10 = vector.load %arg3[%c0_3, %c0_4] : memref<1x32xf32, #tpu.memory_space<vmem>>, vector<1x32xf32>
    %11 = vector.broadcast %10 : vector<1x32xf32> to vector<56x32xf32>
    %12 = arith.addf %9, %11 : vector<56x32xf32>
    %cst_5 = arith.constant 0.000000e+00 : f32
    %13 = vector.broadcast %cst_5 : f32 to vector<56x32xf32>
    %14 = arith.maximumf %12, %13 : vector<56x32xf32>
    %c0_6 = arith.constant 0 : index
    %c0_7 = arith.constant 0 : index
    %15 = vector.load %arg4[%c0_6, %c0_7] : memref<56x32xf32, #tpu.memory_space<vmem>>, vector<56x32xf32>
    tpu.vector_store %arg4[%c0_6, %c0_7], %14 {strides = array<i32>} : memref<56x32xf32, #tpu.memory_space<vmem>>, vector<56x32xf32>,
    return
  }
  func.func @transform_0(%arg0: i32) -> (i32, i32) {
    %c0_i32 = arith.constant 0 : i32
    %c0_i32_0 = arith.constant 0 : i32
    return %arg0, %c0_i32 : i32, i32
  }
  func.func @transform_1(%arg0: i32) -> (i32, i32) {
    %c0_i32 = arith.constant 0 : i32
    %c0_i32_0 = arith.constant 0 : i32
    %c0_i32_1 = arith.constant 0 : i32
    return %c0_i32, %c0_i32_0 : i32, i32
  }
  func.func @transform_2(%arg0: i32) -> (i32, i32) {
    %c0_i32 = arith.constant 0 : i32
    %c0_i32_0 = arith.constant 0 : i32
    %c0_i32_1 = arith.constant 0 : i32
    return %c0_i32, %c0_i32_0 : i32, i32
  }
  func.func @transform_3(%arg0: i32) -> (i32, i32) {
    %c0_i32 = arith.constant 0 : i32
    %c0_i32_0 = arith.constant 0 : i32
    return %arg0, %c0_i32 : i32, i32
  }
}

module attributes {stable_mosaic.version = 11 : i64} {
  func.func @mlp_softmax_kernel(%arg0: i32, %arg1: memref<8x800xbf16, #tpu.memory_space<vmem>>, %arg2: memref<800x100xbf16, #tpu.memory_space<vmem>>, %arg3: memref<1x100xf32, #tpu.memory_space<vmem>>, %arg4: memref<100x10xbf16, #tpu.memory_space<vmem>>, %arg5: memref<1x10xf32, #tpu.memory_space<vmem>>, %arg6: memref<8x10xf32, #tpu.memory_space<vmem>>) attributes {dimension_semantics = [#tpu.dimension_semantics<parallel>], iteration_bounds = array<i64: 1>, scalar_prefetch = 0 : i64, scratch_operands = 0 : i64, tpu.core_type = #tpu.core_type<tc>, window_params = [{transform_indices = @transform_0, window_bounds = array<i64: 8, 800>}, {pipeline_mode = #tpu.pipeline_mode<synchronous>, transform_indices = @transform_1, window_bounds = array<i64: 800, 100>}, {pipeline_mode = #tpu.pipeline_mode<synchronous>, transform_indices = @transform_2, window_bounds = array<i64: 1, 100>}, {pipeline_mode = #tpu.pipeline_mode<synchronous>, transform_indices = @transform_3, window_bounds = array<i64: 100, 10>}, {pipeline_mode = #tpu.pipeline_mode<synchronous>, transform_indices = @transform_4, window_bounds = array<i64: 1, 10>}, {transform_indices = @transform_5, window_bounds = array<i64: 8, 10>}]} {
    %c0 = arith.constant 0 : index
    %c0_0 = arith.constant 0 : index
    %0 = vector.load %arg1[%c0, %c0_0] : memref<8x800xbf16, #tpu.memory_space<vmem>>, vector<8x800xbf16>
    %c0_1 = arith.constant 0 : index
    %c0_2 = arith.constant 0 : index
    %1 = vector.load %arg2[%c0_1, %c0_2] : memref<800x100xbf16, #tpu.memory_space<vmem>>, vector<800x100xbf16>
    %cst = arith.constant dense<0.000000e+00> : vector<8x100xf32>
    %2 = tpu.matmul %0, %1, %cst {dimension_numbers = #tpu.dot_dimension_numbers<[1], [0], [0], [1], [0, 0, 1, 1], [], []>} : vector<8x800xbf16>, vector<800x100xbf16>, vector<8x100xf32> -> vector<8x100xf32>
    %c0_3 = arith.constant 0 : index
    %c0_4 = arith.constant 0 : index
    %3 = vector.load %arg3[%c0_3, %c0_4] : memref<1x100xf32, #tpu.memory_space<vmem>>, vector<1x100xf32>
    %4 = vector.broadcast %3 : vector<1x100xf32> to vector<8x100xf32>
    %5 = arith.addf %2, %4 : vector<8x100xf32>
    %cst_5 = arith.constant 0.000000e+00 : f32
    %6 = vector.broadcast %cst_5 : f32 to vector<8x100xf32>
    %7 = arith.maximumf %5, %6 : vector<8x100xf32>
    %8 = arith.truncf %7 : vector<8x100xf32> to vector<8x100xbf16>
    %c0_6 = arith.constant 0 : index
    %c0_7 = arith.constant 0 : index
    %9 = vector.load %arg4[%c0_6, %c0_7] : memref<100x10xbf16, #tpu.memory_space<vmem>>, vector<100x10xbf16>
    %cst_8 = arith.constant dense<0.000000e+00> : vector<8x10xf32>
    %10 = tpu.matmul %8, %9, %cst_8 {dimension_numbers = #tpu.dot_dimension_numbers<[1], [0], [0], [1], [0, 0, 1, 1], [], []>} : vector<8x100xbf16>, vector<100x10xbf16>, vector<8x10xf32> -> vector<8x10xf32>
    %c0_9 = arith.constant 0 : index
    %c0_10 = arith.constant 0 : index
    %11 = vector.load %arg5[%c0_9, %c0_10] : memref<1x10xf32, #tpu.memory_space<vmem>>, vector<1x10xf32>
    %12 = vector.broadcast %11 : vector<1x10xf32> to vector<8x10xf32>
    %13 = arith.addf %10, %12 : vector<8x10xf32>
    %cst_11 = arith.constant dense<0xFF800000> : vector<8xf32>
    %14 = vector.multi_reduction <maximumf>, %13, %cst_11 [1] : vector<8x10xf32> to vector<8xf32>
    %15 = vector.shape_cast %14 : vector<8xf32> to vector<8x1xf32>
    %16 = vector.broadcast %15 : vector<8x1xf32> to vector<8x10xf32>
    %17 = arith.subf %13, %16 : vector<8x10xf32>
    %18 = math.exp %17 : vector<8x10xf32>
    %cst_12 = arith.constant dense<0.000000e+00> : vector<8xf32>
    %19 = vector.multi_reduction <add>, %18, %cst_12 [1] : vector<8x10xf32> to vector<8xf32>
    %20 = vector.shape_cast %19 : vector<8xf32> to vector<8x1xf32>
    %21 = tpu.reciprocal %20 : vector<8x1xf32> -> vector<8x1xf32>
    %22 = vector.broadcast %21 : vector<8x1xf32> to vector<8x10xf32>
    %23 = arith.mulf %18, %22 : vector<8x10xf32>
    %c0_13 = arith.constant 0 : index
    %c0_14 = arith.constant 0 : index
    %24 = vector.load %arg6[%c0_13, %c0_14] : memref<8x10xf32, #tpu.memory_space<vmem>>, vector<8x10xf32>
    tpu.vector_store %arg6[%c0_13, %c0_14], %23 {strides = array<i32>} : memref<8x10xf32, #tpu.memory_space<vmem>>, vector<8x10xf32>,
    return
  }
  func.func @transform_0(%arg0: i32) -> (i32, i32) {
    %c0_i32 = arith.constant 0 : i32
    %c0_i32_0 = arith.constant 0 : i32
    return %arg0, %c0_i32 : i32, i32
  }
  func.func @transform_1(%arg0: i32) -> (i32, i32) {
    %c0_i32 = arith.constant 0 : i32
    %c0_i32_0 = arith.constant 0 : i32
    %c0_i32_1 = arith.constant 0 : i32
    return %c0_i32, %c0_i32_0 : i32, i32
  }
  func.func @transform_2(%arg0: i32) -> (i32, i32) {
    %c0_i32 = arith.constant 0 : i32
    %c0_i32_0 = arith.constant 0 : i32
    %c0_i32_1 = arith.constant 0 : i32
    return %c0_i32, %c0_i32_0 : i32, i32
  }
  func.func @transform_3(%arg0: i32) -> (i32, i32) {
    %c0_i32 = arith.constant 0 : i32
    %c0_i32_0 = arith.constant 0 : i32
    %c0_i32_1 = arith.constant 0 : i32
    return %c0_i32, %c0_i32_0 : i32, i32
  }
  func.func @transform_4(%arg0: i32) -> (i32, i32) {
    %c0_i32 = arith.constant 0 : i32
    %c0_i32_0 = arith.constant 0 : i32
    %c0_i32_1 = arith.constant 0 : i32
    return %c0_i32, %c0_i32_0 : i32, i32
  }
  func.func @transform_5(%arg0: i32) -> (i32, i32) {
    %c0_i32 = arith.constant 0 : i32
    %c0_i32_0 = arith.constant 0 : i32
    return %arg0, %c0_i32 : i32, i32
  }
}

</mosaic_0001>

<llo_original>
// kernel: cnn_forward.3
$region0: #{cnn_forward.3}
  #allocation0 [shape = 'u32[]', space=smem, size = 0x4, offset = 0x4, fixed_abs, tag = 'smem constant byte address 0x4 - core index']
  #allocation1 [shape = 'u32[144,128]{1,0:T(1,128)}', space=vmem, size = 0x12000, scoped, tag = 'internal scratch']
  %s0 = inlined_call_operand.vmem [shape: bf16[344,36], index: 0, kind: input, shape index: {}]
  %s1 = inlined_call_operand.vmem [shape: bf16[36,64], index: 1, kind: input, shape index: {}]
  %s2 = inlined_call_operand.vmem [shape: f32[1,16], index: 2, kind: input, shape index: {}]
  %s3 = inlined_call_operand.vmem [shape: f32[344,16], index: 3, kind: output, shape index: {}]
  %s4 = sld [smem:[#allocation0]]
  $region22: #{cnn_forward.3} parent=0
    _
  %s6 = ssub.s32 1, %s4
  %s7 = scalar_select 0, %s6, %s4
  // Predicated region
  $region2: #{cnn_forward.3} parent=0 // pred_check
    _
  $region3: #{cnn_forward.3} parent=0 // pred_check_branch
    %9 = sbr.rel (0) target = $region5
  $region4: #{cnn_forward.3} parent=0 // pred_region
    _
  $region5: #{cnn_forward.3} parent=0 // pred_fallthru
    _
  // Predicated region
  $region6: #{cnn_forward.3} parent=0 // pred_check
    _
  $region7: #{cnn_forward.3} parent=0 // pred_check_branch
    %11 = sbr.rel (0) target = $region9
  $region8: #{cnn_forward.3} parent=0 // pred_region
    _
  $region9: #{cnn_forward.3} parent=0 // pred_fallthru
    _
  // Predicated region
  $region10: #{cnn_forward.3} parent=0 // pred_check
    _
  $region11: #{cnn_forward.3} parent=0 // pred_check_branch
    %13 = sbr.rel (0) target = $region13
  $region12: #{cnn_forward.3} parent=0 // pred_region
    _
  $region13: #{cnn_forward.3} parent=0 // pred_fallthru
    _
  %v15 = vld [vmem:[%s0] sm:$0xf]
  %v16 = vld [vmem:[%s0 + $0x4] sm:$0xf]
  %v17 = vld [vmem:[%s0 + $0x8] sm:$0xf]
  %v18 = vld [vmem:[%s0 + $0xc] sm:$0xf]
  %v19 = vld [vmem:[%s0 + $0x10] sm:$0xf]
  %v20 = vld [vmem:[%s0 + $0x14] sm:$0xf]
  %v21 = vld [vmem:[%s0 + $0x18] sm:$0xf]
  %v22 = vld [vmem:[%s0 + $0x1c] sm:$0xf]
  %v23 = vld [vmem:[%s0 + $0x20] sm:$0xf]
  %v24 = vld [vmem:[%s0 + $0x24] sm:$0xf]
  %v25 = vld [vmem:[%s0 + $0x28] sm:$0xf]
  %v26 = vld [vmem:[%s0 + $0x2c] sm:$0xf]
  %v27 = vld [vmem:[%s0 + $0x30] sm:$0xf]
  %v28 = vld [vmem:[%s0 + $0x34] sm:$0xf]
  %v29 = vld [vmem:[%s0 + $0x38] sm:$0xf]
  %v30 = vld [vmem:[%s0 + $0x3c] sm:$0xf]
  %v31 = vld [vmem:[%s0 + $0x40] sm:$0xf]
  %v32 = vld [vmem:[%s0 + $0x44] sm:$0xf]
  %v33 = vld [vmem:[%s0 + $0x48] sm:$0xf]
  %v34 = vld [vmem:[%s0 + $0x4c] sm:$0xf]
  %v35 = vld [vmem:[%s0 + $0x50] sm:$0xf]
  %v36 = vld [vmem:[%s0 + $0x54] sm:$0xf]
  %v37 = vld [vmem:[%s0 + $0x58] sm:$0xf]
  %v38 = vld [vmem:[%s0 + $0x5c] sm:$0xf]
  %v39 = vld [vmem:[%s0 + $0x60] sm:$0xf]
  %v40 = vld [vmem:[%s0 + $0x64] sm:$0xf]
  %v41 = vld [vmem:[%s0 + $0x68] sm:$0xf]
  %v42 = vld [vmem:[%s0 + $0x6c] sm:$0xf]
  %v43 = vld [vmem:[%s0 + $0x70] sm:$0xf]
  %v44 = vld [vmem:[%s0 + $0x74] sm:$0xf]
  %v45 = vld [vmem:[%s0 + $0x78] sm:$0xf]
  %v46 = vld [vmem:[%s0 + $0x7c] sm:$0xf]
  %v47 = vld [vmem:[%s0 + $0x80] sm:$0xf]
  %v48 = vld [vmem:[%s0 + $0x84] sm:$0xf]
  %v49 = vld [vmem:[%s0 + $0x88] sm:$0xf]
  %v50 = vld [vmem:[%s0 + $0x8c] sm:$0xf]
  %v51 = vld [vmem:[%s0 + $0x90] sm:$0xf]
  %v52 = vld [vmem:[%s0 + $0x94] sm:$0xf]
  %v53 = vld [vmem:[%s0 + $0x98] sm:$0xf]
  %v54 = vld [vmem:[%s0 + $0x9c] sm:$0xf]
  %v55 = vld [vmem:[%s0 + $0xa0] sm:$0xf]
  %v56 = vld [vmem:[%s0 + $0xa4] sm:$0xf]
  %v57 = vld [vmem:[%s0 + $0xa8] sm:$0xf]
  %v58 = vld [vmem:[%s1] sm:$0xf]
  %v59 = vld [vmem:[%s1 + $0x4] sm:$0xf]
  %v60 = vld [vmem:[%s1 + $0x8] sm:$0xf]
  %v61 = vld [vmem:[%s1 + $0xc] sm:$0xf]
  %v62 = vld [vmem:[%s1 + $0x10] sm:$0x3]
  %v106 = vunpack.c.l.b16 %v15
  %v107 = vunpack.c.l.b16 %v16
  %v108 = vunpack.c.l.b16 %v17
  %v109 = vunpack.c.l.b16 %v18
  %v110 = vunpack.c.l.b16 %v19
  %v111 = vunpack.c.l.b16 %v20
  %v112 = vunpack.c.l.b16 %v21
  %v113 = vunpack.c.l.b16 %v22
  %v114 = vunpack.c.l.b16 %v23
  %v115 = vunpack.c.l.b16 %v24
  %v116 = vunpack.c.l.b16 %v25
  %v117 = vunpack.c.l.b16 %v26
  %v118 = vunpack.c.l.b16 %v27
  %v119 = vunpack.c.l.b16 %v28
  %v120 = vunpack.c.l.b16 %v29
  %v121 = vunpack.c.l.b16 %v30
  %v122 = vunpack.c.l.b16 %v31
  %v123 = vunpack.c.l.b16 %v32
  %v124 = vunpack.c.l.b16 %v33
  %v125 = vunpack.c.l.b16 %v34
  %v126 = vunpack.c.l.b16 %v35
  %v127 = vunpack.c.l.b16 %v36
  %v128 = vunpack.c.l.b16 %v37
  %v129 = vunpack.c.l.b16 %v38
  %v130 = vunpack.c.l.b16 %v39
  %v131 = vunpack.c.l.b16 %v40
  %v132 = vunpack.c.l.b16 %v41
  %v133 = vunpack.c.l.b16 %v42
  %v134 = vunpack.c.l.b16 %v43
  %v135 = vunpack.c.l.b16 %v44
  %v136 = vunpack.c.l.b16 %v45
  %v137 = vunpack.c.l.b16 %v46
  %v138 = vunpack.c.l.b16 %v47
  %v139 = vunpack.c.l.b16 %v48
  %v140 = vunpack.c.l.b16 %v49
  %v141 = vunpack.c.l.b16 %v50
  %v142 = vunpack.c.l.b16 %v51
  %v143 = vunpack.c.l.b16 %v52
  %v144 = vunpack.c.l.b16 %v53
  %v145 = vunpack.c.l.b16 %v54
  %v146 = vunpack.c.l.b16 %v55
  %v147 = vunpack.c.l.b16 %v56
  %v148 = vunpack.c.l.b16 %v57
  %v149 = vpack.c.b16 %v107, %v106
  %v150 = vpack.c.b16 %v109, %v108
  %v151 = vpack.c.b16 %v111, %v110
  %v152 = vpack.c.b16 %v113, %v112
  %v153 = vpack.c.b16 %v115, %v114
  %v154 = vpack.c.b16 %v117, %v116
  %v155 = vpack.c.b16 %v119, %v118
  %v156 = vpack.c.b16 %v121, %v120
  %v157 = vpack.c.b16 %v123, %v122
  %v158 = vpack.c.b16 %v125, %v124
  %v159 = vpack.c.b16 %v127, %v126
  %v160 = vpack.c.b16 %v129, %v128
  %v161 = vpack.c.b16 %v131, %v130
  %v162 = vpack.c.b16 %v133, %v132
  %v163 = vpack.c.b16 %v135, %v134
  %v164 = vpack.c.b16 %v137, %v136
  %v165 = vpack.c.b16 %v139, %v138
  %v166 = vpack.c.b16 %v141, %v140
  %v167 = vpack.c.b16 %v143, %v142
  %v168 = vpack.c.b16 %v145, %v144
  %v169 = vpack.c.b16 %v147, %v146
  %v170 = vpack.c.b16 %v148, %v148
  %v176 = vunpack.c.l.b16 %v58
  %v177 = vunpack.c.l.b16 %v59
  %v178 = vunpack.c.l.b16 %v60
  %v179 = vunpack.c.l.b16 %v61
  %v180 = vunpack.c.l.b16 %v62
  %v181 = vpack.c.b16 %v177, %v176
  %v182 = vpack.c.b16 %v179, %v178
  %v183 = vpack.c.b16 %v180, %v180
  %vm186 = vcmask 293888
  %v188 = vsel %vm186, %v149, 0
  %v191 = vsel %vm186, %v150, 0
  %v194 = vsel %vm186, %v151, 0
  %v197 = vsel %vm186, %v152, 0
  %v200 = vsel %vm186, %v153, 0
  %v203 = vsel %vm186, %v154, 0
  %v206 = vsel %vm186, %v155, 0
  %v209 = vsel %vm186, %v156, 0
  %v212 = vsel %vm186, %v157, 0
  %v215 = vsel %vm186, %v158, 0
  %v218 = vsel %vm186, %v159, 0
  %v221 = vsel %vm186, %v160, 0
  %v224 = vsel %vm186, %v161, 0
  %v227 = vsel %vm186, %v162, 0
  %v230 = vsel %vm186, %v163, 0
  %v233 = vsel %vm186, %v164, 0
  %v236 = vsel %vm186, %v165, 0
  %v239 = vsel %vm186, %v166, 0
  %v242 = vsel %vm186, %v167, 0
  %v245 = vsel %vm186, %v168, 0
  %v248 = vsel %vm186, %v169, 0
  %v251 = vsel %vm186, %v170, 0
  %vm253 = vcmask 1041408
  %v255 = vsel %vm253, %v183, 0
  %257 = vmatprep.subr.bf16.mxu0 0
  %258 = vmatpush1.bf16.msra.mxu0 0
  %259 = vmatprep.subr.bf16.mxu0 0
  %260 = vmatpush1.bf16.msra.mxu0 0
  %261 = vmatprep.subr.bf16.mxu0 0
  %262 = vmatpush1.bf16.msra.mxu0 0
  %263 = vmatprep.subr.bf16.mxu0 0
  %264 = vmatpush1.bf16.msra.mxu0 0
  %265 = vmatprep.subr.bf16.mxu0 0
  %266 = vmatpush1.bf16.msra.mxu0 0
  %267 = vmatprep.subr.bf16.mxu0 0
  %268 = vmatpush1.bf16.msra.mxu0 %v255
  %269 = vmatprep.subr.bf16.mxu0 0
  %270 = vmatpush1.bf16.msra.mxu0 %v182
  %271 = vmatprep.subr.bf16.mxu0 0
  %272 = vmatpush1.bf16.msra.mxu0 %v181
  %273 = vmatprep.subr.bf16.mxu0 0
  %274 = vmatpush2.bf16.msra.mxu0 0
  %275 = vmatprep.subr.bf16.mxu0 0
  %276 = vmatpush2.bf16.msra.mxu0 0
  %277 = vmatprep.subr.bf16.mxu0 0
  %278 = vmatpush2.bf16.msra.mxu0 0
  %279 = vmatprep.subr.bf16.mxu0 0
  %280 = vmatpush2.bf16.msra.mxu0 0
  %281 = vmatprep.subr.bf16.mxu0 0
  %282 = vmatpush2.bf16.msra.mxu0 0
  %283 = vmatprep.subr.bf16.mxu0 0
  %284 = vmatpush2.bf16.msra.mxu0 0
  %285 = vmatprep.subr.bf16.mxu0 0
  %286 = vmatpush2.bf16.msra.mxu0 0
  %287 = vmatprep.subr.bf16.mxu0 0
  %288 = vmatpush2.bf16.msra.mxu0 0
  %289 = vmatprep.mubr.bf16.mxu0 0
  %290 = vmatmul.mubr.bf16.gmra.mxu0 %v188
  %v291 = vpop.f32.mrf.mxu0
  %v292 = vadd.f32 0.0, %v291
  %v293 = vpop.f32.mrf.mxu0
  %v294 = vpop.f32.mrf.mxu0
  %v295 = vadd.f32 0.0, %v294
  %v296 = vpop.f32.mrf.mxu0
  %297 = vmatprep.mubr.bf16.mxu0 0
  %298 = vmatmul.mubr.bf16.gmra.mxu0 %v191
  %v299 = vpop.f32.mrf.mxu0
  %v300 = vadd.f32 0.0, %v299
  %v301 = vpop.f32.mrf.mxu0
  %v302 = vpop.f32.mrf.mxu0
  %v303 = vadd.f32 0.0, %v302
  %v304 = vpop.f32.mrf.mxu0
  %305 = vmatprep.mubr.bf16.mxu0 0
  %306 = vmatmul.mubr.bf16.gmra.mxu0 %v194
  %v307 = vpop.f32.mrf.mxu0
  %v308 = vadd.f32 0.0, %v307
  %v309 = vpop.f32.mrf.mxu0
  %v310 = vpop.f32.mrf.mxu0
  %v311 = vadd.f32 0.0, %v310
  %v312 = vpop.f32.mrf.mxu0
  %313 = vmatprep.mubr.bf16.mxu0 0
  %314 = vmatmul.mubr.bf16.gmra.mxu0 %v197
  %v315 = vpop.f32.mrf.mxu0
  %v316 = vadd.f32 0.0, %v315
  %v317 = vpop.f32.mrf.mxu0
  %v318 = vpop.f32.mrf.mxu0
  %v319 = vadd.f32 0.0, %v318
  %v320 = vpop.f32.mrf.mxu0
  %321 = vmatprep.mubr.bf16.mxu0 0
  %322 = vmatmul.mubr.bf16.gmra.mxu0 %v200
  %v323 = vpop.f32.mrf.mxu0
  %v324 = vadd.f32 0.0, %v323
  %v325 = vpop.f32.mrf.mxu0
  %v326 = vpop.f32.mrf.mxu0
  %v327 = vadd.f32 0.0, %v326
  %v328 = vpop.f32.mrf.mxu0
  %329 = vmatprep.mubr.bf16.mxu0 0
  %330 = vmatmul.mubr.bf16.gmra.mxu0 %v203
  %v331 = vpop.f32.mrf.mxu0
  %v332 = vadd.f32 0.0, %v331
  %v333 = vpop.f32.mrf.mxu0
  %v334 = vpop.f32.mrf.mxu0
  %v335 = vadd.f32 0.0, %v334
  %v336 = vpop.f32.mrf.mxu0
  %337 = vmatprep.mubr.bf16.mxu0 0
  %338 = vmatmul.mubr.bf16.gmra.mxu0 %v206
  %v339 = vpop.f32.mrf.mxu0
  %v340 = vadd.f32 0.0, %v339
  %v341 = vpop.f32.mrf.mxu0
  %v342 = vpop.f32.mrf.mxu0
  %v343 = vadd.f32 0.0, %v342
  %v344 = vpop.f32.mrf.mxu0
  %345 = vmatprep.mubr.bf16.mxu0 0
  %346 = vmatmul.mubr.bf16.gmra.mxu0 %v209
  %v347 = vpop.f32.mrf.mxu0
  %v348 = vadd.f32 0.0, %v347
  %v349 = vpop.f32.mrf.mxu0
  %v350 = vpop.f32.mrf.mxu0
  %v351 = vadd.f32 0.0, %v350
  %v352 = vpop.f32.mrf.mxu0
  %353 = vmatprep.mubr.bf16.mxu0 0
  %354 = vmatmul.mubr.bf16.gmra.mxu0 %v212
  %v355 = vpop.f32.mrf.mxu0
  %v356 = vadd.f32 0.0, %v355
  %v357 = vpop.f32.mrf.mxu0
  %v358 = vpop.f32.mrf.mxu0
  %v359 = vadd.f32 0.0, %v358
  %v360 = vpop.f32.mrf.mxu0
  %361 = vmatprep.mubr.bf16.mxu0 0
  %362 = vmatmul.mubr.bf16.gmra.mxu0 %v215
  %v363 = vpop.f32.mrf.mxu0
  %v364 = vadd.f32 0.0, %v363
  %v365 = vpop.f32.mrf.mxu0
  %v366 = vpop.f32.mrf.mxu0
  %v367 = vadd.f32 0.0, %v366
  %v368 = vpop.f32.mrf.mxu0
  %369 = vmatprep.mubr.bf16.mxu0 0
  %370 = vmatmul.mubr.bf16.gmra.mxu0 %v218
  %v371 = vpop.f32.mrf.mxu0
  %v372 = vadd.f32 0.0, %v371
  %v373 = vpop.f32.mrf.mxu0
  %v374 = vpop.f32.mrf.mxu0
  %v375 = vadd.f32 0.0, %v374
  %v376 = vpop.f32.mrf.mxu0
  %377 = vmatprep.mubr.bf16.mxu0 0
  %378 = vmatmul.mubr.bf16.gmra.mxu0 %v221
  %v379 = vpop.f32.mrf.mxu0
  %v380 = vadd.f32 0.0, %v379
  %v381 = vpop.f32.mrf.mxu0
  %v382 = vpop.f32.mrf.mxu0
  %v383 = vadd.f32 0.0, %v382
  %v384 = vpop.f32.mrf.mxu0
  %385 = vmatprep.mubr.bf16.mxu0 0
  %386 = vmatmul.mubr.bf16.gmra.mxu0 %v224
  %v387 = vpop.f32.mrf.mxu0
  %v388 = vadd.f32 0.0, %v387
  %v389 = vpop.f32.mrf.mxu0
  %v390 = vpop.f32.mrf.mxu0
  %v391 = vadd.f32 0.0, %v390
  %v392 = vpop.f32.mrf.mxu0
  %393 = vmatprep.mubr.bf16.mxu0 0
  %394 = vmatmul.mubr.bf16.gmra.mxu0 %v227
  %v395 = vpop.f32.mrf.mxu0
  %v396 = vadd.f32 0.0, %v395
  %v397 = vpop.f32.mrf.mxu0
  %v398 = vpop.f32.mrf.mxu0
  %v399 = vadd.f32 0.0, %v398
  %v400 = vpop.f32.mrf.mxu0
  %401 = vmatprep.mubr.bf16.mxu0 0
  %402 = vmatmul.mubr.bf16.gmra.mxu0 %v230
  %v403 = vpop.f32.mrf.mxu0
  %v404 = vadd.f32 0.0, %v403
  %v405 = vpop.f32.mrf.mxu0
  %v406 = vpop.f32.mrf.mxu0
  %v407 = vadd.f32 0.0, %v406
  %v408 = vpop.f32.mrf.mxu0
  %409 = vmatprep.mubr.bf16.mxu0 0
  %410 = vmatmul.mubr.bf16.gmra.mxu0 %v233
  %v411 = vpop.f32.mrf.mxu0
  %v412 = vadd.f32 0.0, %v411
  %v413 = vpop.f32.mrf.mxu0
  %v414 = vpop.f32.mrf.mxu0
  %v415 = vadd.f32 0.0, %v414
  %v416 = vpop.f32.mrf.mxu0
  %417 = vmatprep.mubr.bf16.mxu0 0
  %418 = vmatmul.mubr.bf16.gmra.mxu0 %v236
  %v419 = vpop.f32.mrf.mxu0
  %v420 = vadd.f32 0.0, %v419
  %v421 = vpop.f32.mrf.mxu0
  %v422 = vpop.f32.mrf.mxu0
  %v423 = vadd.f32 0.0, %v422
  %v424 = vpop.f32.mrf.mxu0
  %425 = vmatprep.mubr.bf16.mxu0 0
  %426 = vmatmul.mubr.bf16.gmra.mxu0 %v239
  %v427 = vpop.f32.mrf.mxu0
  %v428 = vadd.f32 0.0, %v427
  %v429 = vpop.f32.mrf.mxu0
  %v430 = vpop.f32.mrf.mxu0
  %v431 = vadd.f32 0.0, %v430
  %v432 = vpop.f32.mrf.mxu0
  %433 = vmatprep.mubr.bf16.mxu0 0
  %434 = vmatmul.mubr.bf16.gmra.mxu0 %v242
  %v435 = vpop.f32.mrf.mxu0
  %v436 = vadd.f32 0.0, %v435
  %v437 = vpop.f32.mrf.mxu0
  %v438 = vpop.f32.mrf.mxu0
  %v439 = vadd.f32 0.0, %v438
  %v440 = vpop.f32.mrf.mxu0
  %441 = vmatprep.mubr.bf16.mxu0 0
  %442 = vmatmul.mubr.bf16.gmra.mxu0 %v245
  %v443 = vpop.f32.mrf.mxu0
  %v444 = vadd.f32 0.0, %v443
  %v445 = vpop.f32.mrf.mxu0
  %v446 = vpop.f32.mrf.mxu0
  %v447 = vadd.f32 0.0, %v446
  %v448 = vpop.f32.mrf.mxu0
  %449 = vmatprep.mubr.bf16.mxu0 0
  %450 = vmatmul.mubr.bf16.gmra.mxu0 %v248
  %v451 = vpop.f32.mrf.mxu0
  %v452 = vadd.f32 0.0, %v451
  %v453 = vpop.f32.mrf.mxu0
  %v454 = vpop.f32.mrf.mxu0
  %v455 = vadd.f32 0.0, %v454
  %v456 = vpop.f32.mrf.mxu0
  %457 = vmatprep.mubr.bf16.mxu0 0
  %458 = vmatmul.mubr.bf16.gmra.mxu0 %v251
  %v459 = vpop.f32.mrf.mxu0
  %v460 = vadd.f32 0.0, %v459
  %v461 = vpop.f32.mrf.mxu0
  %v462 = vpop.f32.mrf.mxu0
  %v463 = vpop.f32.mrf.mxu0
  %464 = vdwg.mxu0
  %508 = vrot.lane.b32.xlu0 %v292, 112
  %v509 = vpop.permute.xlu0 %508
  %510 = vrot.lane.b32.xlu0 %v295, 112
  %v511 = vpop.permute.xlu0 %510
  %512 = vrot.lane.b32.xlu0 %v300, 112
  %v513 = vpop.permute.xlu0 %512
  %514 = vrot.lane.b32.xlu0 %v303, 112
  %v515 = vpop.permute.xlu0 %514
  %516 = vrot.lane.b32.xlu0 %v308, 112
  %v517 = vpop.permute.xlu0 %516
  %518 = vrot.lane.b32.xlu0 %v311, 112
  %v519 = vpop.permute.xlu0 %518
  %520 = vrot.lane.b32.xlu0 %v316, 112
  %v521 = vpop.permute.xlu0 %520
  %522 = vrot.lane.b32.xlu0 %v319, 112
  %v523 = vpop.permute.xlu0 %522
  %524 = vrot.lane.b32.xlu0 %v324, 112
  %v525 = vpop.permute.xlu0 %524
  %526 = vrot.lane.b32.xlu0 %v327, 112
  %v527 = vpop.permute.xlu0 %526
  %528 = vrot.lane.b32.xlu0 %v332, 112
  %v529 = vpop.permute.xlu0 %528
  %530 = vrot.lane.b32.xlu0 %v335, 112
  %v531 = vpop.permute.xlu0 %530
  %532 = vrot.lane.b32.xlu0 %v340, 112
  %v533 = vpop.permute.xlu0 %532
  %534 = vrot.lane.b32.xlu0 %v343, 112
  %v535 = vpop.permute.xlu0 %534
  %536 = vrot.lane.b32.xlu0 %v348, 112
  %v537 = vpop.permute.xlu0 %536
  %538 = vrot.lane.b32.xlu0 %v351, 112
  %v539 = vpop.permute.xlu0 %538
  %540 = vrot.lane.b32.xlu0 %v356, 112
  %v541 = vpop.permute.xlu0 %540
  %542 = vrot.lane.b32.xlu0 %v359, 112
  %v543 = vpop.permute.xlu0 %542
  %544 = vrot.lane.b32.xlu0 %v364, 112
  %v545 = vpop.permute.xlu0 %544
  %546 = vrot.lane.b32.xlu0 %v367, 112
  %v547 = vpop.permute.xlu0 %546
  %548 = vrot.lane.b32.xlu0 %v372, 112
  %v549 = vpop.permute.xlu0 %548
  %550 = vrot.lane.b32.xlu0 %v375, 112
  %v551 = vpop.permute.xlu0 %550
  %552 = vrot.lane.b32.xlu0 %v380, 112
  %v553 = vpop.permute.xlu0 %552
  %554 = vrot.lane.b32.xlu0 %v383, 112
  %v555 = vpop.permute.xlu0 %554
  %556 = vrot.lane.b32.xlu0 %v388, 112
  %v557 = vpop.permute.xlu0 %556
  %558 = vrot.lane.b32.xlu0 %v391, 112
  %v559 = vpop.permute.xlu0 %558
  %560 = vrot.lane.b32.xlu0 %v396, 112
  %v561 = vpop.permute.xlu0 %560
  %562 = vrot.lane.b32.xlu0 %v399, 112
  %v563 = vpop.permute.xlu0 %562
  %564 = vrot.lane.b32.xlu0 %v404, 112
  %v565 = vpop.permute.xlu0 %564
  %566 = vrot.lane.b32.xlu0 %v407, 112
  %v567 = vpop.permute.xlu0 %566
  %568 = vrot.lane.b32.xlu0 %v412, 112
  %v569 = vpop.permute.xlu0 %568
  %570 = vrot.lane.b32.xlu0 %v415, 112
  %v571 = vpop.permute.xlu0 %570
  %572 = vrot.lane.b32.xlu0 %v420, 112
  %v573 = vpop.permute.xlu0 %572
  %574 = vrot.lane.b32.xlu0 %v423, 112
  %v575 = vpop.permute.xlu0 %574
  %576 = vrot.lane.b32.xlu0 %v428, 112
  %v577 = vpop.permute.xlu0 %576
  %578 = vrot.lane.b32.xlu0 %v431, 112
  %v579 = vpop.permute.xlu0 %578
  %580 = vrot.lane.b32.xlu0 %v436, 112
  %v581 = vpop.permute.xlu0 %580
  %582 = vrot.lane.b32.xlu0 %v439, 112
  %v583 = vpop.permute.xlu0 %582
  %584 = vrot.lane.b32.xlu0 %v444, 112
  %v585 = vpop.permute.xlu0 %584
  %586 = vrot.lane.b32.xlu0 %v447, 112
  %v587 = vpop.permute.xlu0 %586
  %588 = vrot.lane.b32.xlu0 %v452, 112
  %v589 = vpop.permute.xlu0 %588
  %590 = vrot.lane.b32.xlu0 %v455, 112
  %v591 = vpop.permute.xlu0 %590
  %592 = vrot.lane.b32.xlu0 %v460, 112
  %v593 = vpop.permute.xlu0 %592
  %v637 = vmax.f32 %v292, %v509
  %v638 = vmax.f32 %v295, %v511
  %v639 = vmax.f32 %v300, %v513
  %v640 = vmax.f32 %v303, %v515
  %v641 = vmax.f32 %v308, %v517
  %v642 = vmax.f32 %v311, %v519
  %v643 = vmax.f32 %v316, %v521
  %v644 = vmax.f32 %v319, %v523
  %v645 = vmax.f32 %v324, %v525
  %v646 = vmax.f32 %v327, %v527
  %v647 = vmax.f32 %v332, %v529
  %v648 = vmax.f32 %v335, %v531
  %v649 = vmax.f32 %v340, %v533
  %v650 = vmax.f32 %v343, %v535
  %v651 = vmax.f32 %v348, %v537
  %v652 = vmax.f32 %v351, %v539
  %v653 = vmax.f32 %v356, %v541
  %v654 = vmax.f32 %v359, %v543
  %v655 = vmax.f32 %v364, %v545
  %v656 = vmax.f32 %v367, %v547
  %v657 = vmax.f32 %v372, %v549
  %v658 = vmax.f32 %v375, %v551
  %v659 = vmax.f32 %v380, %v553
  %v660 = vmax.f32 %v383, %v555
  %v661 = vmax.f32 %v388, %v557
  %v662 = vmax.f32 %v391, %v559
  %v663 = vmax.f32 %v396, %v561
  %v664 = vmax.f32 %v399, %v563
  %v665 = vmax.f32 %v404, %v565
  %v666 = vmax.f32 %v407, %v567
  %v667 = vmax.f32 %v412, %v569
  %v668 = vmax.f32 %v415, %v571
  %v669 = vmax.f32 %v420, %v573
  %v670 = vmax.f32 %v423, %v575
  %v671 = vmax.f32 %v428, %v577
  %v672 = vmax.f32 %v431, %v579
  %v673 = vmax.f32 %v436, %v581
  %v674 = vmax.f32 %v439, %v583
  %v675 = vmax.f32 %v444, %v585
  %v676 = vmax.f32 %v447, %v587
  %v677 = vmax.f32 %v452, %v589
  %v678 = vmax.f32 %v455, %v591
  %v679 = vmax.f32 %v460, %v593
  %723 = vrot.lane.b32.xlu0 %v637, 96
  %v724 = vpop.permute.xlu0 %723
  %725 = vrot.lane.b32.xlu0 %v638, 96
  %v726 = vpop.permute.xlu0 %725
  %727 = vrot.lane.b32.xlu0 %v639, 96
  %v728 = vpop.permute.xlu0 %727
  %729 = vrot.lane.b32.xlu0 %v640, 96
  %v730 = vpop.permute.xlu0 %729
  %731 = vrot.lane.b32.xlu0 %v641, 96
  %v732 = vpop.permute.xlu0 %731
  %733 = vrot.lane.b32.xlu0 %v642, 96
  %v734 = vpop.permute.xlu0 %733
  %735 = vrot.lane.b32.xlu0 %v643, 96
  %v736 = vpop.permute.xlu0 %735
  %737 = vrot.lane.b32.xlu0 %v644, 96
  %v738 = vpop.permute.xlu0 %737
  %739 = vrot.lane.b32.xlu0 %v645, 96
  %v740 = vpop.permute.xlu0 %739
  %741 = vrot.lane.b32.xlu0 %v646, 96
  %v742 = vpop.permute.xlu0 %741
  %743 = vrot.lane.b32.xlu0 %v647, 96
  %v744 = vpop.permute.xlu0 %743
  %745 = vrot.lane.b32.xlu0 %v648, 96
  %v746 = vpop.permute.xlu0 %745
  %747 = vrot.lane.b32.xlu0 %v649, 96
  %v748 = vpop.permute.xlu0 %747
  %749 = vrot.lane.b32.xlu0 %v650, 96
  %v750 = vpop.permute.xlu0 %749
  %751 = vrot.lane.b32.xlu0 %v651, 96
  %v752 = vpop.permute.xlu0 %751
  %753 = vrot.lane.b32.xlu0 %v652, 96
  %v754 = vpop.permute.xlu0 %753
  %755 = vrot.lane.b32.xlu0 %v653, 96
  %v756 = vpop.permute.xlu0 %755
  %757 = vrot.lane.b32.xlu0 %v654, 96
  %v758 = vpop.permute.xlu0 %757
  %759 = vrot.lane.b32.xlu0 %v655, 96
  %v760 = vpop.permute.xlu0 %759
  %761 = vrot.lane.b32.xlu0 %v656, 96
  %v762 = vpop.permute.xlu0 %761
  %763 = vrot.lane.b32.xlu0 %v657, 96
  %v764 = vpop.permute.xlu0 %763
  %765 = vrot.lane.b32.xlu0 %v658, 96
  %v766 = vpop.permute.xlu0 %765
  %767 = vrot.lane.b32.xlu0 %v659, 96
  %v768 = vpop.permute.xlu0 %767
  %769 = vrot.lane.b32.xlu0 %v660, 96
  %v770 = vpop.permute.xlu0 %769
  %771 = vrot.lane.b32.xlu0 %v661, 96
  %v772 = vpop.permute.xlu0 %771
  %773 = vrot.lane.b32.xlu0 %v662, 96
  %v774 = vpop.permute.xlu0 %773
  %775 = vrot.lane.b32.xlu0 %v663, 96
  %v776 = vpop.permute.xlu0 %775
  %777 = vrot.lane.b32.xlu0 %v664, 96
  %v778 = vpop.permute.xlu0 %777
  %779 = vrot.lane.b32.xlu0 %v665, 96
  %v780 = vpop.permute.xlu0 %779
  %781 = vrot.lane.b32.xlu0 %v666, 96
  %v782 = vpop.permute.xlu0 %781
  %783 = vrot.lane.b32.xlu0 %v667, 96
  %v784 = vpop.permute.xlu0 %783
  %785 = vrot.lane.b32.xlu0 %v668, 96
  %v786 = vpop.permute.xlu0 %785
  %787 = vrot.lane.b32.xlu0 %v669, 96
  %v788 = vpop.permute.xlu0 %787
  %789 = vrot.lane.b32.xlu0 %v670, 96
  %v790 = vpop.permute.xlu0 %789
  %791 = vrot.lane.b32.xlu0 %v671, 96
  %v792 = vpop.permute.xlu0 %791
  %793 = vrot.lane.b32.xlu0 %v672, 96
  %v794 = vpop.permute.xlu0 %793
  %795 = vrot.lane.b32.xlu0 %v673, 96
  %v796 = vpop.permute.xlu0 %795
  %797 = vrot.lane.b32.xlu0 %v674, 96
  %v798 = vpop.permute.xlu0 %797
  %799 = vrot.lane.b32.xlu0 %v675, 96
  %v800 = vpop.permute.xlu0 %799
  %801 = vrot.lane.b32.xlu0 %v676, 96
  %v802 = vpop.permute.xlu0 %801
  %803 = vrot.lane.b32.xlu0 %v677, 96
  %v804 = vpop.permute.xlu0 %803
  %805 = vrot.lane.b32.xlu0 %v678, 96
  %v806 = vpop.permute.xlu0 %805
  %807 = vrot.lane.b32.xlu0 %v679, 96
  %v808 = vpop.permute.xlu0 %807
  %v852 = vmax.f32 %v637, %v724
  %v853 = vmax.f32 %v638, %v726
  %v854 = vmax.f32 %v639, %v728
  %v855 = vmax.f32 %v640, %v730
  %v856 = vmax.f32 %v641, %v732
  %v857 = vmax.f32 %v642, %v734
  %v858 = vmax.f32 %v643, %v736
  %v859 = vmax.f32 %v644, %v738
  %v860 = vmax.f32 %v645, %v740
  %v861 = vmax.f32 %v646, %v742
  %v862 = vmax.f32 %v647, %v744
  %v863 = vmax.f32 %v648, %v746
  %v864 = vmax.f32 %v649, %v748
  %v865 = vmax.f32 %v650, %v750
  %v866 = vmax.f32 %v651, %v752
  %v867 = vmax.f32 %v652, %v754
  %v868 = vmax.f32 %v653, %v756
  %v869 = vmax.f32 %v654, %v758
  %v870 = vmax.f32 %v655, %v760
  %v871 = vmax.f32 %v656, %v762
  %v872 = vmax.f32 %v657, %v764
  %v873 = vmax.f32 %v658, %v766
  %v874 = vmax.f32 %v659, %v768
  %v875 = vmax.f32 %v660, %v770
  %v876 = vmax.f32 %v661, %v772
  %v877 = vmax.f32 %v662, %v774
  %v878 = vmax.f32 %v663, %v776
  %v879 = vmax.f32 %v664, %v778
  %v880 = vmax.f32 %v665, %v780
  %v881 = vmax.f32 %v666, %v782
  %v882 = vmax.f32 %v667, %v784
  %v883 = vmax.f32 %v668, %v786
  %v884 = vmax.f32 %v669, %v788
  %v885 = vmax.f32 %v670, %v790
  %v886 = vmax.f32 %v671, %v792
  %v887 = vmax.f32 %v672, %v794
  %v888 = vmax.f32 %v673, %v796
  %v889 = vmax.f32 %v674, %v798
  %v890 = vmax.f32 %v675, %v800
  %v891 = vmax.f32 %v676, %v802
  %v892 = vmax.f32 %v677, %v804
  %v893 = vmax.f32 %v678, %v806
  %v894 = vmax.f32 %v679, %v808
  %v895 = vld [vmem:[%s2] sm:$0x1]
  %v897 = vlaneseq
  %v898 = vshrl.u32 %v897, 7
  %v899 = vsub.s32 0, %v898
  %v900 = vrot.slane %v895, %v899
  %v902 = vadd.f32 %v852, %v900
  %v903 = vadd.f32 %v853, %v900
  %v904 = vadd.f32 %v854, %v900
  %v905 = vadd.f32 %v855, %v900
  %v906 = vadd.f32 %v856, %v900
  %v907 = vadd.f32 %v857, %v900
  %v908 = vadd.f32 %v858, %v900
  %v909 = vadd.f32 %v859, %v900
  %v910 = vadd.f32 %v860, %v900
  %v911 = vadd.f32 %v861, %v900
  %v912 = vadd.f32 %v862, %v900
  %v913 = vadd.f32 %v863, %v900
  %v914 = vadd.f32 %v864, %v900
  %v915 = vadd.f32 %v865, %v900
  %v916 = vadd.f32 %v866, %v900
  %v917 = vadd.f32 %v867, %v900
  %v918 = vadd.f32 %v868, %v900
  %v919 = vadd.f32 %v869, %v900
  %v920 = vadd.f32 %v870, %v900
  %v921 = vadd.f32 %v871, %v900
  %v922 = vadd.f32 %v872, %v900
  %v923 = vadd.f32 %v873, %v900
  %v924 = vadd.f32 %v874, %v900
  %v925 = vadd.f32 %v875, %v900
  %v926 = vadd.f32 %v876, %v900
  %v927 = vadd.f32 %v877, %v900
  %v928 = vadd.f32 %v878, %v900
  %v929 = vadd.f32 %v879, %v900
  %v930 = vadd.f32 %v880, %v900
  %v931 = vadd.f32 %v881, %v900
  %v932 = vadd.f32 %v882, %v900
  %v933 = vadd.f32 %v883, %v900
  %v934 = vadd.f32 %v884, %v900
  %v935 = vadd.f32 %v885, %v900
  %v936 = vadd.f32 %v886, %v900
  %v937 = vadd.f32 %v887, %v900
  %v938 = vadd.f32 %v888, %v900
  %v939 = vadd.f32 %v889, %v900
  %v940 = vadd.f32 %v890, %v900
  %v941 = vadd.f32 %v891, %v900
  %v942 = vadd.f32 %v892, %v900
  %v943 = vadd.f32 %v893, %v900
  %v944 = vadd.f32 %v894, %v900
  %v945 = vmax.f32 %v902, 0.0
  %v946 = vmax.f32 %v903, 0.0
  %v947 = vmax.f32 %v904, 0.0
  %v948 = vmax.f32 %v905, 0.0
  %v949 = vmax.f32 %v906, 0.0
  %v950 = vmax.f32 %v907, 0.0
  %v951 = vmax.f32 %v908, 0.0
  %v952 = vmax.f32 %v909, 0.0
  %v953 = vmax.f32 %v910, 0.0
  %v954 = vmax.f32 %v911, 0.0
  %v955 = vmax.f32 %v912, 0.0
  %v956 = vmax.f32 %v913, 0.0
  %v957 = vmax.f32 %v914, 0.0
  %v958 = vmax.f32 %v915, 0.0
  %v959 = vmax.f32 %v916, 0.0
  %v960 = vmax.f32 %v917, 0.0
  %v961 = vmax.f32 %v918, 0.0
  %v962 = vmax.f32 %v919, 0.0
  %v963 = vmax.f32 %v920, 0.0
  %v964 = vmax.f32 %v921, 0.0
  %v965 = vmax.f32 %v922, 0.0
  %v966 = vmax.f32 %v923, 0.0
  %v967 = vmax.f32 %v924, 0.0
  %v968 = vmax.f32 %v925, 0.0
  %v969 = vmax.f32 %v926, 0.0
  %v970 = vmax.f32 %v927, 0.0
  %v971 = vmax.f32 %v928, 0.0
  %v972 = vmax.f32 %v929, 0.0
  %v973 = vmax.f32 %v930, 0.0
  %v974 = vmax.f32 %v931, 0.0
  %v975 = vmax.f32 %v932, 0.0
  %v976 = vmax.f32 %v933, 0.0
  %v977 = vmax.f32 %v934, 0.0
  %v978 = vmax.f32 %v935, 0.0
  %v979 = vmax.f32 %v936, 0.0
  %v980 = vmax.f32 %v937, 0.0
  %v981 = vmax.f32 %v938, 0.0
  %v982 = vmax.f32 %v939, 0.0
  %v983 = vmax.f32 %v940, 0.0
  %v984 = vmax.f32 %v941, 0.0
  %v985 = vmax.f32 %v942, 0.0
  %v986 = vmax.f32 %v943, 0.0
  %v987 = vmax.f32 %v944, 0.0
  %vm988 = vcmask 130048
  %989 = vst.msk [vmem:[%s3] sm:$0xff] %vm988, %v945
  %990 = vst.msk [vmem:[%s3 + $0x8] sm:$0xff] %vm988, %v946
  %991 = vst.msk [vmem:[%s3 + $0x10] sm:$0xff] %vm988, %v947
  %992 = vst.msk [vmem:[%s3 + $0x18] sm:$0xff] %vm988, %v948
  %993 = vst.msk [vmem:[%s3 + $0x20] sm:$0xff] %vm988, %v949
  %994 = vst.msk [vmem:[%s3 + $0x28] sm:$0xff] %vm988, %v950
  %995 = vst.msk [vmem:[%s3 + $0x30] sm:$0xff] %vm988, %v951
  %996 = vst.msk [vmem:[%s3 + $0x38] sm:$0xff] %vm988, %v952
  %997 = vst.msk [vmem:[%s3 + $0x40] sm:$0xff] %vm988, %v953
  %998 = vst.msk [vmem:[%s3 + $0x48] sm:$0xff] %vm988, %v954
  %999 = vst.msk [vmem:[%s3 + $0x50] sm:$0xff] %vm988, %v955
  %1000 = vst.msk [vmem:[%s3 + $0x58] sm:$0xff] %vm988, %v956
  %1001 = vst.msk [vmem:[%s3 + $0x60] sm:$0xff] %vm988, %v957
  %1002 = vst.msk [vmem:[%s3 + $0x68] sm:$0xff] %vm988, %v958
  %1003 = vst.msk [vmem:[%s3 + $0x70] sm:$0xff] %vm988, %v959
  %1004 = vst.msk [vmem:[%s3 + $0x78] sm:$0xff] %vm988, %v960
  %1005 = vst.msk [vmem:[%s3 + $0x80] sm:$0xff] %vm988, %v961
  %1006 = vst.msk [vmem:[%s3 + $0x88] sm:$0xff] %vm988, %v962
  %1007 = vst.msk [vmem:[%s3 + $0x90] sm:$0xff] %vm988, %v963
  %1008 = vst.msk [vmem:[%s3 + $0x98] sm:$0xff] %vm988, %v964
  %1009 = vst.msk [vmem:[%s3 + $0xa0] sm:$0xff] %vm988, %v965
  %1010 = vst.msk [vmem:[%s3 + $0xa8] sm:$0xff] %vm988, %v966
  %1011 = vst.msk [vmem:[%s3 + $0xb0] sm:$0xff] %vm988, %v967
  %1012 = vst.msk [vmem:[%s3 + $0xb8] sm:$0xff] %vm988, %v968
  %1013 = vst.msk [vmem:[%s3 + $0xc0] sm:$0xff] %vm988, %v969
  %1014 = vst.msk [vmem:[%s3 + $0xc8] sm:$0xff] %vm988, %v970
  %1015 = vst.msk [vmem:[%s3 + $0xd0] sm:$0xff] %vm988, %v971
  %1016 = vst.msk [vmem:[%s3 + $0xd8] sm:$0xff] %vm988, %v972
  %1017 = vst.msk [vmem:[%s3 + $0xe0] sm:$0xff] %vm988, %v973
  %1018 = vst.msk [vmem:[%s3 + $0xe8] sm:$0xff] %vm988, %v974
  %1019 = vst.msk [vmem:[%s3 + $0xf0] sm:$0xff] %vm988, %v975
  %1020 = vst.msk [vmem:[%s3 + $0xf8] sm:$0xff] %vm988, %v976
  %1021 = vst.msk [vmem:[%s3 + $0x100] sm:$0xff] %vm988, %v977
  %1022 = vst.msk [vmem:[%s3 + $0x108] sm:$0xff] %vm988, %v978
  %1023 = vst.msk [vmem:[%s3 + $0x110] sm:$0xff] %vm988, %v979
  %1024 = vst.msk [vmem:[%s3 + $0x118] sm:$0xff] %vm988, %v980
  %1025 = vst.msk [vmem:[%s3 + $0x120] sm:$0xff] %vm988, %v981
  %1026 = vst.msk [vmem:[%s3 + $0x128] sm:$0xff] %vm988, %v982
  %1027 = vst.msk [vmem:[%s3 + $0x130] sm:$0xff] %vm988, %v983
  %1028 = vst.msk [vmem:[%s3 + $0x138] sm:$0xff] %vm988, %v984
  %1029 = vst.msk [vmem:[%s3 + $0x140] sm:$0xff] %vm988, %v985
  %1030 = vst.msk [vmem:[%s3 + $0x148] sm:$0xff] %vm988, %v986
  %1031 = vst.msk [vmem:[%s3 + $0x150] sm:$0xff] %vm988, %v987
  // Predicated region
  $region14: #{cnn_forward.3} parent=0 // pred_check
    _
  $region15: #{cnn_forward.3} parent=0 // pred_check_branch
    %1033 = sbr.rel (0) target = $region17
  $region16: #{cnn_forward.3} parent=0 // pred_region
    _
  $region17: #{cnn_forward.3} parent=0 // pred_fallthru
    _
  // Predicated region
  $region18: #{cnn_forward.3} parent=0 // pred_check
    _
  $region19: #{cnn_forward.3} parent=0 // pred_check_branch
    %1035 = sbr.rel (0) target = $region21
  $region20: #{cnn_forward.3} parent=0 // pred_region
    _
  $region21: #{cnn_forward.3} parent=0 // pred_fallthru
    _

// kernel: cnn_forward.4
$region0: #{cnn_forward.4}
  #allocation0 [shape = 'u32[]', space=smem, size = 0x4, offset = 0x4, fixed_abs, tag = 'smem constant byte address 0x4 - core index']
  #allocation1 [shape = 'u32[144,128]{1,0:T(1,128)}', space=vmem, size = 0x12000, scoped, tag = 'internal scratch']
  %s0 = inlined_call_operand.vmem [shape: bf16[56,576], index: 0, kind: input, shape index: {}]
  %s1 = inlined_call_operand.vmem [shape: bf16[576,128], index: 1, kind: input, shape index: {}]
  %s2 = inlined_call_operand.vmem [shape: f32[1,32], index: 2, kind: input, shape index: {}]
  %s3 = inlined_call_operand.vmem [shape: f32[56,32], index: 3, kind: output, shape index: {}]
  %s4 = sld [smem:[#allocation0]]
  $region22: #{cnn_forward.4} parent=0
    _
  %s6 = ssub.s32 1, %s4
  %s7 = scalar_select 0, %s6, %s4
  // Predicated region
  $region2: #{cnn_forward.4} parent=0 // pred_check
    _
  $region3: #{cnn_forward.4} parent=0 // pred_check_branch
    %9 = sbr.rel (0) target = $region5
  $region4: #{cnn_forward.4} parent=0 // pred_region
    _
  $region5: #{cnn_forward.4} parent=0 // pred_fallthru
    _
  // Predicated region
  $region6: #{cnn_forward.4} parent=0 // pred_check
    _
  $region7: #{cnn_forward.4} parent=0 // pred_check_branch
    %11 = sbr.rel (0) target = $region9
  $region8: #{cnn_forward.4} parent=0 // pred_region
    _
  $region9: #{cnn_forward.4} parent=0 // pred_fallthru
    _
  // Predicated region
  $region10: #{cnn_forward.4} parent=0 // pred_check
    _
  $region11: #{cnn_forward.4} parent=0 // pred_check_branch
    %13 = sbr.rel (0) target = $region13
  $region12: #{cnn_forward.4} parent=0 // pred_region
    _
  $region13: #{cnn_forward.4} parent=0 // pred_fallthru
    _
  %v15 = vld [vmem:[%s0] sm:$0xff]
  %v16 = vld [vmem:[%s0 + $0x8] sm:$0xff]
  %v17 = vld [vmem:[%s0 + $0x10] sm:$0xf]
  %v18 = vld [vmem:[%s0 + $0x14] sm:$0xff]
  %v19 = vld [vmem:[%s0 + $0x1c] sm:$0xff]
  %v20 = vld [vmem:[%s0 + $0x24] sm:$0xf]
  %v21 = vld [vmem:[%s0 + $0x28] sm:$0xff]
  %v22 = vld [vmem:[%s0 + $0x30] sm:$0xff]
  %v23 = vld [vmem:[%s0 + $0x38] sm:$0xf]
  %v24 = vld [vmem:[%s0 + $0x3c] sm:$0xff]
  %v25 = vld [vmem:[%s0 + $0x44] sm:$0xff]
  %v26 = vld [vmem:[%s0 + $0x4c] sm:$0xf]
  %v27 = vld [vmem:[%s0 + $0x50] sm:$0xff]
  %v28 = vld [vmem:[%s0 + $0x58] sm:$0xff]
  %v29 = vld [vmem:[%s0 + $0x60] sm:$0xf]
  %v30 = vld [vmem:[%s0 + $0x64] sm:$0xff]
  %v31 = vld [vmem:[%s0 + $0x6c] sm:$0xff]
  %v32 = vld [vmem:[%s0 + $0x74] sm:$0xf]
  %v33 = vld [vmem:[%s0 + $0x78] sm:$0xff]
  %v34 = vld [vmem:[%s0 + $0x80] sm:$0xff]
  %v35 = vld [vmem:[%s0 + $0x88] sm:$0xf]
  %v36 = vld [vmem:[%s1] sm:$0xf]
  %v37 = vld [vmem:[%s1 + $0x4] sm:$0xf]
  %v38 = vld [vmem:[%s1 + $0x8] sm:$0xf]
  %v39 = vld [vmem:[%s1 + $0xc] sm:$0xf]
  %v40 = vld [vmem:[%s1 + $0x10] sm:$0xf]
  %v41 = vld [vmem:[%s1 + $0x14] sm:$0xf]
  %v42 = vld [vmem:[%s1 + $0x18] sm:$0xf]
  %v43 = vld [vmem:[%s1 + $0x1c] sm:$0xf]
  %v44 = vld [vmem:[%s1 + $0x20] sm:$0xf]
  %v45 = vld [vmem:[%s1 + $0x24] sm:$0xf]
  %v46 = vld [vmem:[%s1 + $0x28] sm:$0xf]
  %v47 = vld [vmem:[%s1 + $0x2c] sm:$0xf]
  %v48 = vld [vmem:[%s1 + $0x30] sm:$0xf]
  %v49 = vld [vmem:[%s1 + $0x34] sm:$0xf]
  %v50 = vld [vmem:[%s1 + $0x38] sm:$0xf]
  %v51 = vld [vmem:[%s1 + $0x3c] sm:$0xf]
  %v52 = vld [vmem:[%s1 + $0x40] sm:$0xf]
  %v53 = vld [vmem:[%s1 + $0x44] sm:$0xf]
  %v54 = vld [vmem:[%s1 + $0x48] sm:$0xf]
  %v55 = vld [vmem:[%s1 + $0x4c] sm:$0xf]
  %v56 = vld [vmem:[%s1 + $0x50] sm:$0xf]
  %v57 = vld [vmem:[%s1 + $0x54] sm:$0xf]
  %v58 = vld [vmem:[%s1 + $0x58] sm:$0xf]
  %v59 = vld [vmem:[%s1 + $0x5c] sm:$0xf]
  %v60 = vld [vmem:[%s1 + $0x60] sm:$0xf]
  %v61 = vld [vmem:[%s1 + $0x64] sm:$0xf]
  %v62 = vld [vmem:[%s1 + $0x68] sm:$0xf]
  %v63 = vld [vmem:[%s1 + $0x6c] sm:$0xf]
  %v64 = vld [vmem:[%s1 + $0x70] sm:$0xf]
  %v65 = vld [vmem:[%s1 + $0x74] sm:$0xf]
  %v66 = vld [vmem:[%s1 + $0x78] sm:$0xf]
  %v67 = vld [vmem:[%s1 + $0x7c] sm:$0xf]
  %v68 = vld [vmem:[%s1 + $0x80] sm:$0xf]
  %v69 = vld [vmem:[%s1 + $0x84] sm:$0xf]
  %v70 = vld [vmem:[%s1 + $0x88] sm:$0xf]
  %v71 = vld [vmem:[%s1 + $0x8c] sm:$0xf]
  %v72 = vld [vmem:[%s1 + $0x90] sm:$0xf]
  %v73 = vld [vmem:[%s1 + $0x94] sm:$0xf]
  %v74 = vld [vmem:[%s1 + $0x98] sm:$0xf]
  %v75 = vld [vmem:[%s1 + $0x9c] sm:$0xf]
  %v76 = vld [vmem:[%s1 + $0xa0] sm:$0xf]
  %v77 = vld [vmem:[%s1 + $0xa4] sm:$0xf]
  %v78 = vld [vmem:[%s1 + $0xa8] sm:$0xf]
  %v79 = vld [vmem:[%s1 + $0xac] sm:$0xf]
  %v80 = vld [vmem:[%s1 + $0xb0] sm:$0xf]
  %v81 = vld [vmem:[%s1 + $0xb4] sm:$0xf]
  %v82 = vld [vmem:[%s1 + $0xb8] sm:$0xf]
  %v83 = vld [vmem:[%s1 + $0xbc] sm:$0xf]
  %v84 = vld [vmem:[%s1 + $0xc0] sm:$0xf]
  %v85 = vld [vmem:[%s1 + $0xc4] sm:$0xf]
  %v86 = vld [vmem:[%s1 + $0xc8] sm:$0xf]
  %v87 = vld [vmem:[%s1 + $0xcc] sm:$0xf]
  %v88 = vld [vmem:[%s1 + $0xd0] sm:$0xf]
  %v89 = vld [vmem:[%s1 + $0xd4] sm:$0xf]
  %v90 = vld [vmem:[%s1 + $0xd8] sm:$0xf]
  %v91 = vld [vmem:[%s1 + $0xdc] sm:$0xf]
  %v92 = vld [vmem:[%s1 + $0xe0] sm:$0xf]
  %v93 = vld [vmem:[%s1 + $0xe4] sm:$0xf]
  %v94 = vld [vmem:[%s1 + $0xe8] sm:$0xf]
  %v95 = vld [vmem:[%s1 + $0xec] sm:$0xf]
  %v96 = vld [vmem:[%s1 + $0xf0] sm:$0xf]
  %v97 = vld [vmem:[%s1 + $0xf4] sm:$0xf]
  %v98 = vld [vmem:[%s1 + $0xf8] sm:$0xf]
  %v99 = vld [vmem:[%s1 + $0xfc] sm:$0xf]
  %v100 = vld [vmem:[%s1 + $0x100] sm:$0xf]
  %v101 = vld [vmem:[%s1 + $0x104] sm:$0xf]
  %v102 = vld [vmem:[%s1 + $0x108] sm:$0xf]
  %v103 = vld [vmem:[%s1 + $0x10c] sm:$0xf]
  %v104 = vld [vmem:[%s1 + $0x110] sm:$0xf]
  %v105 = vld [vmem:[%s1 + $0x114] sm:$0xf]
  %v106 = vld [vmem:[%s1 + $0x118] sm:$0xf]
  %v107 = vld [vmem:[%s1 + $0x11c] sm:$0xf]
  %v129 = vunpack.c.l.b16 %v15
  %v130 = vunpack.c.h.b16 %v15
  %v131 = vunpack.c.l.b16 %v16
  %v132 = vunpack.c.h.b16 %v16
  %v133 = vunpack.c.l.b16 %v17
  %v134 = vunpack.c.l.b16 %v18
  %v135 = vunpack.c.h.b16 %v18
  %v136 = vunpack.c.l.b16 %v19
  %v137 = vunpack.c.h.b16 %v19
  %v138 = vunpack.c.l.b16 %v20
  %v139 = vunpack.c.l.b16 %v21
  %v140 = vunpack.c.h.b16 %v21
  %v141 = vunpack.c.l.b16 %v22
  %v142 = vunpack.c.h.b16 %v22
  %v143 = vunpack.c.l.b16 %v23
  %v144 = vunpack.c.l.b16 %v24
  %v145 = vunpack.c.h.b16 %v24
  %v146 = vunpack.c.l.b16 %v25
  %v147 = vunpack.c.h.b16 %v25
  %v148 = vunpack.c.l.b16 %v26
  %v149 = vunpack.c.l.b16 %v27
  %v150 = vunpack.c.h.b16 %v27
  %v151 = vunpack.c.l.b16 %v28
  %v152 = vunpack.c.h.b16 %v28
  %v153 = vunpack.c.l.b16 %v29
  %v154 = vunpack.c.l.b16 %v30
  %v155 = vunpack.c.h.b16 %v30
  %v156 = vunpack.c.l.b16 %v31
  %v157 = vunpack.c.h.b16 %v31
  %v158 = vunpack.c.l.b16 %v32
  %v159 = vunpack.c.l.b16 %v33
  %v160 = vunpack.c.h.b16 %v33
  %v161 = vunpack.c.l.b16 %v34
  %v162 = vunpack.c.h.b16 %v34
  %v163 = vunpack.c.l.b16 %v35
  %v164 = vpack.c.b16 %v134, %v129
  %v165 = vpack.c.b16 %v135, %v130
  %v166 = vpack.c.b16 %v136, %v131
  %v167 = vpack.c.b16 %v137, %v132
  %v168 = vpack.c.b16 %v138, %v133
  %v169 = vpack.c.b16 %v144, %v139
  %v170 = vpack.c.b16 %v145, %v140
  %v171 = vpack.c.b16 %v146, %v141
  %v172 = vpack.c.b16 %v147, %v142
  %v173 = vpack.c.b16 %v148, %v143
  %v174 = vpack.c.b16 %v154, %v149
  %v175 = vpack.c.b16 %v155, %v150
  %v176 = vpack.c.b16 %v156, %v151
  %v177 = vpack.c.b16 %v157, %v152
  %v178 = vpack.c.b16 %v158, %v153
  %v179 = vpack.c.b16 %v159, %v159
  %v180 = vpack.c.b16 %v160, %v160
  %v181 = vpack.c.b16 %v161, %v161
  %v182 = vpack.c.b16 %v162, %v162
  %v183 = vpack.c.b16 %v163, %v163
  %v272 = vunpack.c.l.b16 %v36
  %v273 = vunpack.c.l.b16 %v37
  %v274 = vunpack.c.l.b16 %v38
  %v275 = vunpack.c.l.b16 %v39
  %v276 = vunpack.c.l.b16 %v40
  %v277 = vunpack.c.l.b16 %v41
  %v278 = vunpack.c.l.b16 %v42
  %v279 = vunpack.c.l.b16 %v43
  %v280 = vunpack.c.l.b16 %v44
  %v281 = vunpack.c.l.b16 %v45
  %v282 = vunpack.c.l.b16 %v46
  %v283 = vunpack.c.l.b16 %v47
  %v284 = vunpack.c.l.b16 %v48
  %v285 = vunpack.c.l.b16 %v49
  %v286 = vunpack.c.l.b16 %v50
  %v287 = vunpack.c.l.b16 %v51
  %v288 = vunpack.c.l.b16 %v52
  %v289 = vunpack.c.l.b16 %v53
  %v290 = vunpack.c.l.b16 %v54
  %v291 = vunpack.c.l.b16 %v55
  %v292 = vunpack.c.l.b16 %v56
  %v293 = vunpack.c.l.b16 %v57
  %v294 = vunpack.c.l.b16 %v58
  %v295 = vunpack.c.l.b16 %v59
  %v296 = vunpack.c.l.b16 %v60
  %v297 = vunpack.c.l.b16 %v61
  %v298 = vunpack.c.l.b16 %v62
  %v299 = vunpack.c.l.b16 %v63
  %v300 = vunpack.c.l.b16 %v64
  %v301 = vunpack.c.l.b16 %v65
  %v302 = vunpack.c.l.b16 %v66
  %v303 = vunpack.c.l.b16 %v67
  %v304 = vunpack.c.l.b16 %v68
  %v305 = vunpack.c.l.b16 %v69
  %v306 = vunpack.c.l.b16 %v70
  %v307 = vunpack.c.l.b16 %v71
  %v308 = vunpack.c.l.b16 %v72
  %v309 = vunpack.c.l.b16 %v73
  %v310 = vunpack.c.l.b16 %v74
  %v311 = vunpack.c.l.b16 %v75
  %v312 = vunpack.c.l.b16 %v76
  %v313 = vunpack.c.l.b16 %v77
  %v314 = vunpack.c.l.b16 %v78
  %v315 = vunpack.c.l.b16 %v79
  %v316 = vunpack.c.l.b16 %v80
  %v317 = vunpack.c.l.b16 %v81
  %v318 = vunpack.c.l.b16 %v82
  %v319 = vunpack.c.l.b16 %v83
  %v320 = vunpack.c.l.b16 %v84
  %v321 = vunpack.c.l.b16 %v85
  %v322 = vunpack.c.l.b16 %v86
  %v323 = vunpack.c.l.b16 %v87
  %v324 = vunpack.c.l.b16 %v88
  %v325 = vunpack.c.l.b16 %v89
  %v326 = vunpack.c.l.b16 %v90
  %v327 = vunpack.c.l.b16 %v91
  %v328 = vunpack.c.l.b16 %v92
  %v329 = vunpack.c.l.b16 %v93
  %v330 = vunpack.c.l.b16 %v94
  %v331 = vunpack.c.l.b16 %v95
  %v332 = vunpack.c.l.b16 %v96
  %v333 = vunpack.c.l.b16 %v97
  %v334 = vunpack.c.l.b16 %v98
  %v335 = vunpack.c.l.b16 %v99
  %v336 = vunpack.c.l.b16 %v100
  %v337 = vunpack.c.l.b16 %v101
  %v338 = vunpack.c.l.b16 %v102
  %v339 = vunpack.c.l.b16 %v103
  %v340 = vunpack.c.l.b16 %v104
  %v341 = vunpack.c.l.b16 %v105
  %v342 = vunpack.c.l.b16 %v106
  %v343 = vunpack.c.l.b16 %v107
  %v344 = vpack.c.b16 %v273, %v272
  %v345 = vpack.c.b16 %v275, %v274
  %v346 = vpack.c.b16 %v277, %v276
  %v347 = vpack.c.b16 %v279, %v278
  %v348 = vpack.c.b16 %v281, %v280
  %v349 = vpack.c.b16 %v283, %v282
  %v350 = vpack.c.b16 %v285, %v284
  %v351 = vpack.c.b16 %v287, %v286
  %v352 = vpack.c.b16 %v289, %v288
  %v353 = vpack.c.b16 %v291, %v290
  %v354 = vpack.c.b16 %v293, %v292
  %v355 = vpack.c.b16 %v295, %v294
  %v356 = vpack.c.b16 %v297, %v296
  %v357 = vpack.c.b16 %v299, %v298
  %v358 = vpack.c.b16 %v301, %v300
  %v359 = vpack.c.b16 %v303, %v302
  %v360 = vpack.c.b16 %v305, %v304
  %v361 = vpack.c.b16 %v307, %v306
  %v362 = vpack.c.b16 %v309, %v308
  %v363 = vpack.c.b16 %v311, %v310
  %v364 = vpack.c.b16 %v313, %v312
  %v365 = vpack.c.b16 %v315, %v314
  %v366 = vpack.c.b16 %v317, %v316
  %v367 = vpack.c.b16 %v319, %v318
  %v368 = vpack.c.b16 %v321, %v320
  %v369 = vpack.c.b16 %v323, %v322
  %v370 = vpack.c.b16 %v325, %v324
  %v371 = vpack.c.b16 %v327, %v326
  %v372 = vpack.c.b16 %v329, %v328
  %v373 = vpack.c.b16 %v331, %v330
  %v374 = vpack.c.b16 %v333, %v332
  %v375 = vpack.c.b16 %v335, %v334
  %v376 = vpack.c.b16 %v337, %v336
  %v377 = vpack.c.b16 %v339, %v338
  %v378 = vpack.c.b16 %v341, %v340
  %v379 = vpack.c.b16 %v343, %v342
  %vm416 = vcmask 523264
  %v418 = vsel %vm416, %v168, 0
  %v421 = vsel %vm416, %v173, 0
  %v424 = vsel %vm416, %v178, 0
  %v427 = vsel %vm416, %v183, 0
  %429 = vmatprep.subr.bf16.mxu0 0
  %430 = vmatpush1.bf16.msra.mxu0 %v351
  %431 = vmatprep.subr.bf16.mxu0 0
  %432 = vmatpush1.bf16.msra.mxu0 %v350
  %433 = vmatprep.subr.bf16.mxu0 0
  %434 = vmatpush1.bf16.msra.mxu0 %v349
  %435 = vmatprep.subr.bf16.mxu0 0
  %436 = vmatpush1.bf16.msra.mxu0 %v348
  %437 = vmatprep.subr.bf16.mxu0 0
  %438 = vmatpush1.bf16.msra.mxu0 %v347
  %439 = vmatprep.subr.bf16.mxu0 0
  %440 = vmatpush1.bf16.msra.mxu0 %v346
  %441 = vmatprep.subr.bf16.mxu0 0
  %442 = vmatpush1.bf16.msra.mxu0 %v345
  %443 = vmatprep.subr.bf16.mxu0 0
  %444 = vmatpush1.bf16.msra.mxu0 %v344
  %445 = vmatprep.subr.bf16.mxu0 0
  %446 = vmatpush2.bf16.msra.mxu0 %v359
  %447 = vmatprep.subr.bf16.mxu0 0
  %448 = vmatpush2.bf16.msra.mxu0 %v358
  %449 = vmatprep.subr.bf16.mxu0 0
  %450 = vmatpush2.bf16.msra.mxu0 %v357
  %451 = vmatprep.subr.bf16.mxu0 0
  %452 = vmatpush2.bf16.msra.mxu0 %v356
  %453 = vmatprep.subr.bf16.mxu0 0
  %454 = vmatpush2.bf16.msra.mxu0 %v355
  %455 = vmatprep.subr.bf16.mxu0 0
  %456 = vmatpush2.bf16.msra.mxu0 %v354
  %457 = vmatprep.subr.bf16.mxu0 0
  %458 = vmatpush2.bf16.msra.mxu0 %v353
  %459 = vmatprep.subr.bf16.mxu0 0
  %460 = vmatpush2.bf16.msra.mxu0 %v352
  %461 = vmatprep.mubr.bf16.mxu0 %v165
  %462 = vmatmul.mubr.bf16.gmra.mxu0 %v164
  %v463 = vpop.f32.mrf.mxu0
  %v464 = vadd.f32 0.0, %v463
  %v465 = vpop.f32.mrf.mxu0
  %v466 = vpop.f32.mrf.mxu0
  %v467 = vadd.f32 0.0, %v466
  %v468 = vpop.f32.mrf.mxu0
  %469 = vmatprep.mubr.bf16.mxu0 %v170
  %470 = vmatmul.mubr.bf16.gmra.mxu0 %v169
  %v471 = vpop.f32.mrf.mxu0
  %v472 = vadd.f32 0.0, %v471
  %v473 = vpop.f32.mrf.mxu0
  %v474 = vpop.f32.mrf.mxu0
  %v475 = vadd.f32 0.0, %v474
  %v476 = vpop.f32.mrf.mxu0
  %477 = vmatprep.mubr.bf16.mxu0 %v175
  %478 = vmatmul.mubr.bf16.gmra.mxu0 %v174
  %v479 = vpop.f32.mrf.mxu0
  %v480 = vadd.f32 0.0, %v479
  %v481 = vpop.f32.mrf.mxu0
  %v482 = vpop.f32.mrf.mxu0
  %v483 = vadd.f32 0.0, %v482
  %v484 = vpop.f32.mrf.mxu0
  %485 = vmatprep.mubr.bf16.mxu0 %v180
  %486 = vmatmul.mubr.bf16.gmra.mxu0 %v179
  %v487 = vpop.f32.mrf.mxu0
  %v488 = vadd.f32 0.0, %v487
  %v489 = vpop.f32.mrf.mxu0
  %v490 = vpop.f32.mrf.mxu0
  %v491 = vpop.f32.mrf.mxu0
  %492 = vdwg.mxu0
  %493 = vmatprep.subr.bf16.mxu0 0
  %494 = vmatpush1.bf16.msra.mxu0 %v367
  %495 = vmatprep.subr.bf16.mxu0 0
  %496 = vmatpush1.bf16.msra.mxu0 %v366
  %497 = vmatprep.subr.bf16.mxu0 0
  %498 = vmatpush1.bf16.msra.mxu0 %v365
  %499 = vmatprep.subr.bf16.mxu0 0
  %500 = vmatpush1.bf16.msra.mxu0 %v364
  %501 = vmatprep.subr.bf16.mxu0 0
  %502 = vmatpush1.bf16.msra.mxu0 %v363
  %503 = vmatprep.subr.bf16.mxu0 0
  %504 = vmatpush1.bf16.msra.mxu0 %v362
  %505 = vmatprep.subr.bf16.mxu0 0
  %506 = vmatpush1.bf16.msra.mxu0 %v361
  %507 = vmatprep.subr.bf16.mxu0 0
  %508 = vmatpush1.bf16.msra.mxu0 %v360
  %509 = vmatprep.subr.bf16.mxu0 0
  %510 = vmatpush2.bf16.msra.mxu0 %v375
  %511 = vmatprep.subr.bf16.mxu0 0
  %512 = vmatpush2.bf16.msra.mxu0 %v374
  %513 = vmatprep.subr.bf16.mxu0 0
  %514 = vmatpush2.bf16.msra.mxu0 %v373
  %515 = vmatprep.subr.bf16.mxu0 0
  %516 = vmatpush2.bf16.msra.mxu0 %v372
  %517 = vmatprep.subr.bf16.mxu0 0
  %518 = vmatpush2.bf16.msra.mxu0 %v371
  %519 = vmatprep.subr.bf16.mxu0 0
  %520 = vmatpush2.bf16.msra.mxu0 %v370
  %521 = vmatprep.subr.bf16.mxu0 0
  %522 = vmatpush2.bf16.msra.mxu0 %v369
  %523 = vmatprep.subr.bf16.mxu0 0
  %524 = vmatpush2.bf16.msra.mxu0 %v368
  %525 = vmatprep.mubr.bf16.mxu0 %v167
  %526 = vmatmul.mubr.bf16.gmra.mxu0 %v166
  %v527 = vpop.f32.mrf.mxu0
  %v528 = vadd.f32 %v464, %v527
  %v529 = vpop.f32.mrf.mxu0
  %v530 = vpop.f32.mrf.mxu0
  %v531 = vadd.f32 %v467, %v530
  %v532 = vpop.f32.mrf.mxu0
  %533 = vmatprep.mubr.bf16.mxu0 %v172
  %534 = vmatmul.mubr.bf16.gmra.mxu0 %v171
  %v535 = vpop.f32.mrf.mxu0
  %v536 = vadd.f32 %v472, %v535
  %v537 = vpop.f32.mrf.mxu0
  %v538 = vpop.f32.mrf.mxu0
  %v539 = vadd.f32 %v475, %v538
  %v540 = vpop.f32.mrf.mxu0
  %541 = vmatprep.mubr.bf16.mxu0 %v177
  %542 = vmatmul.mubr.bf16.gmra.mxu0 %v176
  %v543 = vpop.f32.mrf.mxu0
  %v544 = vadd.f32 %v480, %v543
  %v545 = vpop.f32.mrf.mxu0
  %v546 = vpop.f32.mrf.mxu0
  %v547 = vadd.f32 %v483, %v546
  %v548 = vpop.f32.mrf.mxu0
  %549 = vmatprep.mubr.bf16.mxu0 %v182
  %550 = vmatmul.mubr.bf16.gmra.mxu0 %v181
  %v551 = vpop.f32.mrf.mxu0
  %v552 = vadd.f32 %v488, %v551
  %v553 = vpop.f32.mrf.mxu0
  %v554 = vpop.f32.mrf.mxu0
  %v555 = vpop.f32.mrf.mxu0
  %556 = vdwg.mxu0
  %557 = vmatprep.subr.bf16.mxu0 0
  %558 = vmatpush1.bf16.msra.mxu0 0
  %559 = vmatprep.subr.bf16.mxu0 0
  %560 = vmatpush1.bf16.msra.mxu0 0
  %561 = vmatprep.subr.bf16.mxu0 0
  %562 = vmatpush1.bf16.msra.mxu0 0
  %563 = vmatprep.subr.bf16.mxu0 0
  %564 = vmatpush1.bf16.msra.mxu0 0
  %565 = vmatprep.subr.bf16.mxu0 0
  %566 = vmatpush1.bf16.msra.mxu0 %v379
  %567 = vmatprep.subr.bf16.mxu0 0
  %568 = vmatpush1.bf16.msra.mxu0 %v378
  %569 = vmatprep.subr.bf16.mxu0 0
  %570 = vmatpush1.bf16.msra.mxu0 %v377
  %571 = vmatprep.subr.bf16.mxu0 0
  %572 = vmatpush1.bf16.msra.mxu0 %v376
  %573 = vmatprep.subr.bf16.mxu0 0
  %574 = vmatpush2.bf16.msra.mxu0 0
  %575 = vmatprep.subr.bf16.mxu0 0
  %576 = vmatpush2.bf16.msra.mxu0 0
  %577 = vmatprep.subr.bf16.mxu0 0
  %578 = vmatpush2.bf16.msra.mxu0 0
  %579 = vmatprep.subr.bf16.mxu0 0
  %580 = vmatpush2.bf16.msra.mxu0 0
  %581 = vmatprep.subr.bf16.mxu0 0
  %582 = vmatpush2.bf16.msra.mxu0 0
  %583 = vmatprep.subr.bf16.mxu0 0
  %584 = vmatpush2.bf16.msra.mxu0 0
  %585 = vmatprep.subr.bf16.mxu0 0
  %586 = vmatpush2.bf16.msra.mxu0 0
  %587 = vmatprep.subr.bf16.mxu0 0
  %588 = vmatpush2.bf16.msra.mxu0 0
  %589 = vmatprep.mubr.bf16.mxu0 0
  %590 = vmatmul.mubr.bf16.gmra.mxu0 %v418
  %v591 = vpop.f32.mrf.mxu0
  %v592 = vadd.f32 %v528, %v591
  %v593 = vpop.f32.mrf.mxu0
  %v594 = vpop.f32.mrf.mxu0
  %v595 = vadd.f32 %v531, %v594
  %v596 = vpop.f32.mrf.mxu0
  %597 = vmatprep.mubr.bf16.mxu0 0
  %598 = vmatmul.mubr.bf16.gmra.mxu0 %v421
  %v599 = vpop.f32.mrf.mxu0
  %v600 = vadd.f32 %v536, %v599
  %v601 = vpop.f32.mrf.mxu0
  %v602 = vpop.f32.mrf.mxu0
  %v603 = vadd.f32 %v539, %v602
  %v604 = vpop.f32.mrf.mxu0
  %605 = vmatprep.mubr.bf16.mxu0 0
  %606 = vmatmul.mubr.bf16.gmra.mxu0 %v424
  %v607 = vpop.f32.mrf.mxu0
  %v608 = vadd.f32 %v544, %v607
  %v609 = vpop.f32.mrf.mxu0
  %v610 = vpop.f32.mrf.mxu0
  %v611 = vadd.f32 %v547, %v610
  %v612 = vpop.f32.mrf.mxu0
  %613 = vmatprep.mubr.bf16.mxu0 0
  %614 = vmatmul.mubr.bf16.gmra.mxu0 %v427
  %v615 = vpop.f32.mrf.mxu0
  %v616 = vadd.f32 %v552, %v615
  %v617 = vpop.f32.mrf.mxu0
  %v618 = vpop.f32.mrf.mxu0
  %v619 = vpop.f32.mrf.mxu0
  %620 = vdwg.mxu0
  %628 = vrot.lane.b32.xlu0 %v592, 96
  %v629 = vpop.permute.xlu0 %628
  %630 = vrot.lane.b32.xlu0 %v595, 96
  %v631 = vpop.permute.xlu0 %630
  %632 = vrot.lane.b32.xlu0 %v600, 96
  %v633 = vpop.permute.xlu0 %632
  %634 = vrot.lane.b32.xlu0 %v603, 96
  %v635 = vpop.permute.xlu0 %634
  %636 = vrot.lane.b32.xlu0 %v608, 96
  %v637 = vpop.permute.xlu0 %636
  %638 = vrot.lane.b32.xlu0 %v611, 96
  %v639 = vpop.permute.xlu0 %638
  %640 = vrot.lane.b32.xlu0 %v616, 96
  %v641 = vpop.permute.xlu0 %640
  %v649 = vmax.f32 %v592, %v629
  %v650 = vmax.f32 %v595, %v631
  %v651 = vmax.f32 %v600, %v633
  %v652 = vmax.f32 %v603, %v635
  %v653 = vmax.f32 %v608, %v637
  %v654 = vmax.f32 %v611, %v639
  %v655 = vmax.f32 %v616, %v641
  %663 = vrot.lane.b32.xlu0 %v649, 64
  %v664 = vpop.permute.xlu0 %663
  %665 = vrot.lane.b32.xlu0 %v650, 64
  %v666 = vpop.permute.xlu0 %665
  %667 = vrot.lane.b32.xlu0 %v651, 64
  %v668 = vpop.permute.xlu0 %667
  %669 = vrot.lane.b32.xlu0 %v652, 64
  %v670 = vpop.permute.xlu0 %669
  %671 = vrot.lane.b32.xlu0 %v653, 64
  %v672 = vpop.permute.xlu0 %671
  %673 = vrot.lane.b32.xlu0 %v654, 64
  %v674 = vpop.permute.xlu0 %673
  %675 = vrot.lane.b32.xlu0 %v655, 64
  %v676 = vpop.permute.xlu0 %675
  %v684 = vmax.f32 %v649, %v664
  %v685 = vmax.f32 %v650, %v666
  %v686 = vmax.f32 %v651, %v668
  %v687 = vmax.f32 %v652, %v670
  %v688 = vmax.f32 %v653, %v672
  %v689 = vmax.f32 %v654, %v674
  %v690 = vmax.f32 %v655, %v676
  %v691 = vld [vmem:[%s2] sm:$0x1]
  %v693 = vlaneseq
  %v694 = vshrl.u32 %v693, 7
  %v695 = vsub.s32 0, %v694
  %v696 = vrot.slane %v691, %v695
  %v698 = vadd.f32 %v684, %v696
  %v699 = vadd.f32 %v685, %v696
  %v700 = vadd.f32 %v686, %v696
  %v701 = vadd.f32 %v687, %v696
  %v702 = vadd.f32 %v688, %v696
  %v703 = vadd.f32 %v689, %v696
  %v704 = vadd.f32 %v690, %v696
  %v705 = vmax.f32 %v698, 0.0
  %v706 = vmax.f32 %v699, 0.0
  %v707 = vmax.f32 %v700, 0.0
  %v708 = vmax.f32 %v701, 0.0
  %v709 = vmax.f32 %v702, 0.0
  %v710 = vmax.f32 %v703, 0.0
  %v711 = vmax.f32 %v704, 0.0
  %vm712 = vcmask 261120
  %713 = vst.msk [vmem:[%s3] sm:$0xff] %vm712, %v705
  %714 = vst.msk [vmem:[%s3 + $0x8] sm:$0xff] %vm712, %v706
  %715 = vst.msk [vmem:[%s3 + $0x10] sm:$0xff] %vm712, %v707
  %716 = vst.msk [vmem:[%s3 + $0x18] sm:$0xff] %vm712, %v708
  %717 = vst.msk [vmem:[%s3 + $0x20] sm:$0xff] %vm712, %v709
  %718 = vst.msk [vmem:[%s3 + $0x28] sm:$0xff] %vm712, %v710
  %719 = vst.msk [vmem:[%s3 + $0x30] sm:$0xff] %vm712, %v711
  // Predicated region
  $region14: #{cnn_forward.4} parent=0 // pred_check
    _
  $region15: #{cnn_forward.4} parent=0 // pred_check_branch
    %721 = sbr.rel (0) target = $region17
  $region16: #{cnn_forward.4} parent=0 // pred_region
    _
  $region17: #{cnn_forward.4} parent=0 // pred_fallthru
    _
  // Predicated region
  $region18: #{cnn_forward.4} parent=0 // pred_check
    _
  $region19: #{cnn_forward.4} parent=0 // pred_check_branch
    %723 = sbr.rel (0) target = $region21
  $region20: #{cnn_forward.4} parent=0 // pred_region
    _
  $region21: #{cnn_forward.4} parent=0 // pred_fallthru
    _

// kernel: cnn_forward.5
$region0: #{cnn_forward.5}
  #allocation0 [shape = 'u32[]', space=smem, size = 0x4, offset = 0x4, fixed_abs, tag = 'smem constant byte address 0x4 - core index']
  #allocation1 [shape = 'u32[144,128]{1,0:T(1,128)}', space=vmem, size = 0x12000, scoped, tag = 'internal scratch']
  %s0 = inlined_call_operand.vmem [shape: bf16[8,800], index: 0, kind: input, shape index: {}]
  %s1 = inlined_call_operand.vmem [shape: bf16[800,100], index: 1, kind: input, shape index: {}]
  %s2 = inlined_call_operand.vmem [shape: f32[1,100], index: 2, kind: input, shape index: {}]
  %s3 = inlined_call_operand.vmem [shape: bf16[100,10], index: 3, kind: input, shape index: {}]
  %s4 = inlined_call_operand.vmem [shape: f32[1,10], index: 4, kind: input, shape index: {}]
  %s5 = inlined_call_operand.vmem [shape: f32[8,10], index: 5, kind: output, shape index: {}]
  %s6 = sld [smem:[#allocation0]]
  $region30: #{cnn_forward.5} parent=0
    _
  %s8 = ssub.s32 1, %s6
  %s9 = scalar_select 0, %s8, %s6
  // Predicated region
  $region2: #{cnn_forward.5} parent=0 // pred_check
    _
  $region3: #{cnn_forward.5} parent=0 // pred_check_branch
    %11 = sbr.rel (0) target = $region5
  $region4: #{cnn_forward.5} parent=0 // pred_region
    _
  $region5: #{cnn_forward.5} parent=0 // pred_fallthru
    _
  // Predicated region
  $region6: #{cnn_forward.5} parent=0 // pred_check
    _
  $region7: #{cnn_forward.5} parent=0 // pred_check_branch
    %13 = sbr.rel (0) target = $region9
  $region8: #{cnn_forward.5} parent=0 // pred_region
    _
  $region9: #{cnn_forward.5} parent=0 // pred_fallthru
    _
  // Predicated region
  $region10: #{cnn_forward.5} parent=0 // pred_check
    _
  $region11: #{cnn_forward.5} parent=0 // pred_check_branch
    %15 = sbr.rel (0) target = $region13
  $region12: #{cnn_forward.5} parent=0 // pred_region
    _
  $region13: #{cnn_forward.5} parent=0 // pred_fallthru
    _
  // Predicated region
  $region14: #{cnn_forward.5} parent=0 // pred_check
    _
  $region15: #{cnn_forward.5} parent=0 // pred_check_branch
    %17 = sbr.rel (0) target = $region17
  $region16: #{cnn_forward.5} parent=0 // pred_region
    _
  $region17: #{cnn_forward.5} parent=0 // pred_fallthru
    _
  // Predicated region
  $region18: #{cnn_forward.5} parent=0 // pred_check
    _
  $region19: #{cnn_forward.5} parent=0 // pred_check_branch
    %19 = sbr.rel (0) target = $region21
  $region20: #{cnn_forward.5} parent=0 // pred_region
    _
  $region21: #{cnn_forward.5} parent=0 // pred_fallthru
    _
  %v21 = vld [vmem:[%s0] sm:$0xff]
  %v22 = vld [vmem:[%s0 + $0x8] sm:$0xff]
  %v23 = vld [vmem:[%s0 + $0x10] sm:$0xff]
  %v24 = vld [vmem:[%s0 + $0x18] sm:$0xf]
  %v25 = vld [vmem:[%s1] sm:$0xf]
  %v26 = vld [vmem:[%s1 + $0x4] sm:$0xf]
  %v27 = vld [vmem:[%s1 + $0x8] sm:$0xf]
  %v28 = vld [vmem:[%s1 + $0xc] sm:$0xf]
  %v29 = vld [vmem:[%s1 + $0x10] sm:$0xf]
  %v30 = vld [vmem:[%s1 + $0x14] sm:$0xf]
  %v31 = vld [vmem:[%s1 + $0x18] sm:$0xf]
  %v32 = vld [vmem:[%s1 + $0x1c] sm:$0xf]
  %v33 = vld [vmem:[%s1 + $0x20] sm:$0xf]
  %v34 = vld [vmem:[%s1 + $0x24] sm:$0xf]
  %v35 = vld [vmem:[%s1 + $0x28] sm:$0xf]
  %v36 = vld [vmem:[%s1 + $0x2c] sm:$0xf]
  %v37 = vld [vmem:[%s1 + $0x30] sm:$0xf]
  %v38 = vld [vmem:[%s1 + $0x34] sm:$0xf]
  %v39 = vld [vmem:[%s1 + $0x38] sm:$0xf]
  %v40 = vld [vmem:[%s1 + $0x3c] sm:$0xf]
  %v41 = vld [vmem:[%s1 + $0x40] sm:$0xf]
  %v42 = vld [vmem:[%s1 + $0x44] sm:$0xf]
  %v43 = vld [vmem:[%s1 + $0x48] sm:$0xf]
  %v44 = vld [vmem:[%s1 + $0x4c] sm:$0xf]
  %v45 = vld [vmem:[%s1 + $0x50] sm:$0xf]
  %v46 = vld [vmem:[%s1 + $0x54] sm:$0xf]
  %v47 = vld [vmem:[%s1 + $0x58] sm:$0xf]
  %v48 = vld [vmem:[%s1 + $0x5c] sm:$0xf]
  %v49 = vld [vmem:[%s1 + $0x60] sm:$0xf]
  %v50 = vld [vmem:[%s1 + $0x64] sm:$0xf]
  %v51 = vld [vmem:[%s1 + $0x68] sm:$0xf]
  %v52 = vld [vmem:[%s1 + $0x6c] sm:$0xf]
  %v53 = vld [vmem:[%s1 + $0x70] sm:$0xf]
  %v54 = vld [vmem:[%s1 + $0x74] sm:$0xf]
  %v55 = vld [vmem:[%s1 + $0x78] sm:$0xf]
  %v56 = vld [vmem:[%s1 + $0x7c] sm:$0xf]
  %v57 = vld [vmem:[%s1 + $0x80] sm:$0xf]
  %v58 = vld [vmem:[%s1 + $0x84] sm:$0xf]
  %v59 = vld [vmem:[%s1 + $0x88] sm:$0xf]
  %v60 = vld [vmem:[%s1 + $0x8c] sm:$0xf]
  %v61 = vld [vmem:[%s1 + $0x90] sm:$0xf]
  %v62 = vld [vmem:[%s1 + $0x94] sm:$0xf]
  %v63 = vld [vmem:[%s1 + $0x98] sm:$0xf]
  %v64 = vld [vmem:[%s1 + $0x9c] sm:$0xf]
  %v65 = vld [vmem:[%s1 + $0xa0] sm:$0xf]
  %v66 = vld [vmem:[%s1 + $0xa4] sm:$0xf]
  %v67 = vld [vmem:[%s1 + $0xa8] sm:$0xf]
  %v68 = vld [vmem:[%s1 + $0xac] sm:$0xf]
  %v69 = vld [vmem:[%s1 + $0xb0] sm:$0xf]
  %v70 = vld [vmem:[%s1 + $0xb4] sm:$0xf]
  %v71 = vld [vmem:[%s1 + $0xb8] sm:$0xf]
  %v72 = vld [vmem:[%s1 + $0xbc] sm:$0xf]
  %v73 = vld [vmem:[%s1 + $0xc0] sm:$0xf]
  %v74 = vld [vmem:[%s1 + $0xc4] sm:$0xf]
  %v75 = vld [vmem:[%s1 + $0xc8] sm:$0xf]
  %v76 = vld [vmem:[%s1 + $0xcc] sm:$0xf]
  %v77 = vld [vmem:[%s1 + $0xd0] sm:$0xf]
  %v78 = vld [vmem:[%s1 + $0xd4] sm:$0xf]
  %v79 = vld [vmem:[%s1 + $0xd8] sm:$0xf]
  %v80 = vld [vmem:[%s1 + $0xdc] sm:$0xf]
  %v81 = vld [vmem:[%s1 + $0xe0] sm:$0xf]
  %v82 = vld [vmem:[%s1 + $0xe4] sm:$0xf]
  %v83 = vld [vmem:[%s1 + $0xe8] sm:$0xf]
  %v84 = vld [vmem:[%s1 + $0xec] sm:$0xf]
  %v85 = vld [vmem:[%s1 + $0xf0] sm:$0xf]
  %v86 = vld [vmem:[%s1 + $0xf4] sm:$0xf]
  %v87 = vld [vmem:[%s1 + $0xf8] sm:$0xf]
  %v88 = vld [vmem:[%s1 + $0xfc] sm:$0xf]
  %v89 = vld [vmem:[%s1 + $0x100] sm:$0xf]
  %v90 = vld [vmem:[%s1 + $0x104] sm:$0xf]
  %v91 = vld [vmem:[%s1 + $0x108] sm:$0xf]
  %v92 = vld [vmem:[%s1 + $0x10c] sm:$0xf]
  %v93 = vld [vmem:[%s1 + $0x110] sm:$0xf]
  %v94 = vld [vmem:[%s1 + $0x114] sm:$0xf]
  %v95 = vld [vmem:[%s1 + $0x118] sm:$0xf]
  %v96 = vld [vmem:[%s1 + $0x11c] sm:$0xf]
  %v97 = vld [vmem:[%s1 + $0x120] sm:$0xf]
  %v98 = vld [vmem:[%s1 + $0x124] sm:$0xf]
  %v99 = vld [vmem:[%s1 + $0x128] sm:$0xf]
  %v100 = vld [vmem:[%s1 + $0x12c] sm:$0xf]
  %v101 = vld [vmem:[%s1 + $0x130] sm:$0xf]
  %v102 = vld [vmem:[%s1 + $0x134] sm:$0xf]
  %v103 = vld [vmem:[%s1 + $0x138] sm:$0xf]
  %v104 = vld [vmem:[%s1 + $0x13c] sm:$0xf]
  %v105 = vld [vmem:[%s1 + $0x140] sm:$0xf]
  %v106 = vld [vmem:[%s1 + $0x144] sm:$0xf]
  %v107 = vld [vmem:[%s1 + $0x148] sm:$0xf]
  %v108 = vld [vmem:[%s1 + $0x14c] sm:$0xf]
  %v109 = vld [vmem:[%s1 + $0x150] sm:$0xf]
  %v110 = vld [vmem:[%s1 + $0x154] sm:$0xf]
  %v111 = vld [vmem:[%s1 + $0x158] sm:$0xf]
  %v112 = vld [vmem:[%s1 + $0x15c] sm:$0xf]
  %v113 = vld [vmem:[%s1 + $0x160] sm:$0xf]
  %v114 = vld [vmem:[%s1 + $0x164] sm:$0xf]
  %v115 = vld [vmem:[%s1 + $0x168] sm:$0xf]
  %v116 = vld [vmem:[%s1 + $0x16c] sm:$0xf]
  %v117 = vld [vmem:[%s1 + $0x170] sm:$0xf]
  %v118 = vld [vmem:[%s1 + $0x174] sm:$0xf]
  %v119 = vld [vmem:[%s1 + $0x178] sm:$0xf]
  %v120 = vld [vmem:[%s1 + $0x17c] sm:$0xf]
  %v121 = vld [vmem:[%s1 + $0x180] sm:$0xf]
  %v122 = vld [vmem:[%s1 + $0x184] sm:$0xf]
  %v123 = vld [vmem:[%s1 + $0x188] sm:$0xf]
  %v124 = vld [vmem:[%s1 + $0x18c] sm:$0xf]
  %v125 = vld [vmem:[%s2] sm:$0x1]
  %v127 = vlaneseq
  %v128 = vshrl.u32 %v127, 7
  %v129 = vsub.s32 0, %v128
  %v130 = vrot.slane %v125, %v129
  %v136 = vunpack.c.l.b16 %v21
  %v137 = vunpack.c.h.b16 %v21
  %v138 = vunpack.c.l.b16 %v22
  %v139 = vunpack.c.h.b16 %v22
  %v140 = vunpack.c.l.b16 %v23
  %v141 = vunpack.c.h.b16 %v23
  %v142 = vunpack.c.l.b16 %v24
  %v143 = vpack.c.b16 %v136, %v136
  %v144 = vpack.c.b16 %v137, %v137
  %v145 = vpack.c.b16 %v138, %v138
  %v146 = vpack.c.b16 %v139, %v139
  %v147 = vpack.c.b16 %v140, %v140
  %v148 = vpack.c.b16 %v141, %v141
  %v149 = vpack.c.b16 %v142, %v142
  %v256 = vunpack.c.l.b16 %v25
  %v257 = vunpack.c.l.b16 %v26
  %v258 = vunpack.c.l.b16 %v27
  %v259 = vunpack.c.l.b16 %v28
  %v260 = vunpack.c.l.b16 %v29
  %v261 = vunpack.c.l.b16 %v30
  %v262 = vunpack.c.l.b16 %v31
  %v263 = vunpack.c.l.b16 %v32
  %v264 = vunpack.c.l.b16 %v33
  %v265 = vunpack.c.l.b16 %v34
  %v266 = vunpack.c.l.b16 %v35
  %v267 = vunpack.c.l.b16 %v36
  %v268 = vunpack.c.l.b16 %v37
  %v269 = vunpack.c.l.b16 %v38
  %v270 = vunpack.c.l.b16 %v39
  %v271 = vunpack.c.l.b16 %v40
  %v272 = vunpack.c.l.b16 %v41
  %v273 = vunpack.c.l.b16 %v42
  %v274 = vunpack.c.l.b16 %v43
  %v275 = vunpack.c.l.b16 %v44
  %v276 = vunpack.c.l.b16 %v45
  %v277 = vunpack.c.l.b16 %v46
  %v278 = vunpack.c.l.b16 %v47
  %v279 = vunpack.c.l.b16 %v48
  %v280 = vunpack.c.l.b16 %v49
  %v281 = vunpack.c.l.b16 %v50
  %v282 = vunpack.c.l.b16 %v51
  %v283 = vunpack.c.l.b16 %v52
  %v284 = vunpack.c.l.b16 %v53
  %v285 = vunpack.c.l.b16 %v54
  %v286 = vunpack.c.l.b16 %v55
  %v287 = vunpack.c.l.b16 %v56
  %v288 = vunpack.c.l.b16 %v57
  %v289 = vunpack.c.l.b16 %v58
  %v290 = vunpack.c.l.b16 %v59
  %v291 = vunpack.c.l.b16 %v60
  %v292 = vunpack.c.l.b16 %v61
  %v293 = vunpack.c.l.b16 %v62
  %v294 = vunpack.c.l.b16 %v63
  %v295 = vunpack.c.l.b16 %v64
  %v296 = vunpack.c.l.b16 %v65
  %v297 = vunpack.c.l.b16 %v66
  %v298 = vunpack.c.l.b16 %v67
  %v299 = vunpack.c.l.b16 %v68
  %v300 = vunpack.c.l.b16 %v69
  %v301 = vunpack.c.l.b16 %v70
  %v302 = vunpack.c.l.b16 %v71
  %v303 = vunpack.c.l.b16 %v72
  %v304 = vunpack.c.l.b16 %v73
  %v305 = vunpack.c.l.b16 %v74
  %v306 = vunpack.c.l.b16 %v75
  %v307 = vunpack.c.l.b16 %v76
  %v308 = vunpack.c.l.b16 %v77
  %v309 = vunpack.c.l.b16 %v78
  %v310 = vunpack.c.l.b16 %v79
  %v311 = vunpack.c.l.b16 %v80
  %v312 = vunpack.c.l.b16 %v81
  %v313 = vunpack.c.l.b16 %v82
  %v314 = vunpack.c.l.b16 %v83
  %v315 = vunpack.c.l.b16 %v84
  %v316 = vunpack.c.l.b16 %v85
  %v317 = vunpack.c.l.b16 %v86
  %v318 = vunpack.c.l.b16 %v87
  %v319 = vunpack.c.l.b16 %v88
  %v320 = vunpack.c.l.b16 %v89
  %v321 = vunpack.c.l.b16 %v90
  %v322 = vunpack.c.l.b16 %v91
  %v323 = vunpack.c.l.b16 %v92
  %v324 = vunpack.c.l.b16 %v93
  %v325 = vunpack.c.l.b16 %v94
  %v326 = vunpack.c.l.b16 %v95
  %v327 = vunpack.c.l.b16 %v96
  %v328 = vunpack.c.l.b16 %v97
  %v329 = vunpack.c.l.b16 %v98
  %v330 = vunpack.c.l.b16 %v99
  %v331 = vunpack.c.l.b16 %v100
  %v332 = vunpack.c.l.b16 %v101
  %v333 = vunpack.c.l.b16 %v102
  %v334 = vunpack.c.l.b16 %v103
  %v335 = vunpack.c.l.b16 %v104
  %v336 = vunpack.c.l.b16 %v105
  %v337 = vunpack.c.l.b16 %v106
  %v338 = vunpack.c.l.b16 %v107
  %v339 = vunpack.c.l.b16 %v108
  %v340 = vunpack.c.l.b16 %v109
  %v341 = vunpack.c.l.b16 %v110
  %v342 = vunpack.c.l.b16 %v111
  %v343 = vunpack.c.l.b16 %v112
  %v344 = vunpack.c.l.b16 %v113
  %v345 = vunpack.c.l.b16 %v114
  %v346 = vunpack.c.l.b16 %v115
  %v347 = vunpack.c.l.b16 %v116
  %v348 = vunpack.c.l.b16 %v117
  %v349 = vunpack.c.l.b16 %v118
  %v350 = vunpack.c.l.b16 %v119
  %v351 = vunpack.c.l.b16 %v120
  %v352 = vunpack.c.l.b16 %v121
  %v353 = vunpack.c.l.b16 %v122
  %v354 = vunpack.c.l.b16 %v123
  %v355 = vunpack.c.l.b16 %v124
  %v356 = vpack.c.b16 %v257, %v256
  %v357 = vpack.c.b16 %v259, %v258
  %v358 = vpack.c.b16 %v261, %v260
  %v359 = vpack.c.b16 %v263, %v262
  %v360 = vpack.c.b16 %v265, %v264
  %v361 = vpack.c.b16 %v267, %v266
  %v362 = vpack.c.b16 %v269, %v268
  %v363 = vpack.c.b16 %v271, %v270
  %v364 = vpack.c.b16 %v273, %v272
  %v365 = vpack.c.b16 %v275, %v274
  %v366 = vpack.c.b16 %v277, %v276
  %v367 = vpack.c.b16 %v279, %v278
  %v368 = vpack.c.b16 %v281, %v280
  %v369 = vpack.c.b16 %v283, %v282
  %v370 = vpack.c.b16 %v285, %v284
  %v371 = vpack.c.b16 %v287, %v286
  %v372 = vpack.c.b16 %v289, %v288
  %v373 = vpack.c.b16 %v291, %v290
  %v374 = vpack.c.b16 %v293, %v292
  %v375 = vpack.c.b16 %v295, %v294
  %v376 = vpack.c.b16 %v297, %v296
  %v377 = vpack.c.b16 %v299, %v298
  %v378 = vpack.c.b16 %v301, %v300
  %v379 = vpack.c.b16 %v303, %v302
  %v380 = vpack.c.b16 %v305, %v304
  %v381 = vpack.c.b16 %v307, %v306
  %v382 = vpack.c.b16 %v309, %v308
  %v383 = vpack.c.b16 %v311, %v310
  %v384 = vpack.c.b16 %v313, %v312
  %v385 = vpack.c.b16 %v315, %v314
  %v386 = vpack.c.b16 %v317, %v316
  %v387 = vpack.c.b16 %v319, %v318
  %v388 = vpack.c.b16 %v321, %v320
  %v389 = vpack.c.b16 %v323, %v322
  %v390 = vpack.c.b16 %v325, %v324
  %v391 = vpack.c.b16 %v327, %v326
  %v392 = vpack.c.b16 %v329, %v328
  %v393 = vpack.c.b16 %v331, %v330
  %v394 = vpack.c.b16 %v333, %v332
  %v395 = vpack.c.b16 %v335, %v334
  %v396 = vpack.c.b16 %v337, %v336
  %v397 = vpack.c.b16 %v339, %v338
  %v398 = vpack.c.b16 %v341, %v340
  %v399 = vpack.c.b16 %v343, %v342
  %v400 = vpack.c.b16 %v345, %v344
  %v401 = vpack.c.b16 %v347, %v346
  %v402 = vpack.c.b16 %v349, %v348
  %v403 = vpack.c.b16 %v351, %v350
  %v404 = vpack.c.b16 %v353, %v352
  %v405 = vpack.c.b16 %v355, %v354
  %vm456 = vcmask 261120
  %v458 = vsel %vm456, %v149, 0
  %460 = vmatprep.subr.bf16.mxu0 0
  %461 = vmatpush1.bf16.msra.mxu0 %v363
  %462 = vmatprep.subr.bf16.mxu0 0
  %463 = vmatpush1.bf16.msra.mxu0 %v362
  %464 = vmatprep.subr.bf16.mxu0 0
  %465 = vmatpush1.bf16.msra.mxu0 %v361
  %466 = vmatprep.subr.bf16.mxu0 0
  %467 = vmatpush1.bf16.msra.mxu0 %v360
  %468 = vmatprep.subr.bf16.mxu0 0
  %469 = vmatpush1.bf16.msra.mxu0 %v359
  %470 = vmatprep.subr.bf16.mxu0 0
  %471 = vmatpush1.bf16.msra.mxu0 %v358
  %472 = vmatprep.subr.bf16.mxu0 0
  %473 = vmatpush1.bf16.msra.mxu0 %v357
  %474 = vmatprep.subr.bf16.mxu0 0
  %475 = vmatpush1.bf16.msra.mxu0 %v356
  %476 = vmatprep.subr.bf16.mxu0 0
  %477 = vmatpush2.bf16.msra.mxu0 %v371
  %478 = vmatprep.subr.bf16.mxu0 0
  %479 = vmatpush2.bf16.msra.mxu0 %v370
  %480 = vmatprep.subr.bf16.mxu0 0
  %481 = vmatpush2.bf16.msra.mxu0 %v369
  %482 = vmatprep.subr.bf16.mxu0 0
  %483 = vmatpush2.bf16.msra.mxu0 %v368
  %484 = vmatprep.subr.bf16.mxu0 0
  %485 = vmatpush2.bf16.msra.mxu0 %v367
  %486 = vmatprep.subr.bf16.mxu0 0
  %487 = vmatpush2.bf16.msra.mxu0 %v366
  %488 = vmatprep.subr.bf16.mxu0 0
  %489 = vmatpush2.bf16.msra.mxu0 %v365
  %490 = vmatprep.subr.bf16.mxu0 0
  %491 = vmatpush2.bf16.msra.mxu0 %v364
  %492 = vmatprep.mubr.bf16.mxu0 %v144
  %493 = vmatmul.mubr.bf16.gmra.mxu0 %v143
  %v494 = vpop.f32.mrf.mxu0
  %v495 = vadd.f32 %v130, %v494
  %v496 = vpop.f32.mrf.mxu0
  %v497 = vpop.f32.mrf.mxu0
  %v498 = vpop.f32.mrf.mxu0
  %499 = vdwg.mxu0
  %500 = vmatprep.subr.bf16.mxu0 0
  %501 = vmatpush1.bf16.msra.mxu0 %v379
  %502 = vmatprep.subr.bf16.mxu0 0
  %503 = vmatpush1.bf16.msra.mxu0 %v378
  %504 = vmatprep.subr.bf16.mxu0 0
  %505 = vmatpush1.bf16.msra.mxu0 %v377
  %506 = vmatprep.subr.bf16.mxu0 0
  %507 = vmatpush1.bf16.msra.mxu0 %v376
  %508 = vmatprep.subr.bf16.mxu0 0
  %509 = vmatpush1.bf16.msra.mxu0 %v375
  %510 = vmatprep.subr.bf16.mxu0 0
  %511 = vmatpush1.bf16.msra.mxu0 %v374
  %512 = vmatprep.subr.bf16.mxu0 0
  %513 = vmatpush1.bf16.msra.mxu0 %v373
  %514 = vmatprep.subr.bf16.mxu0 0
  %515 = vmatpush1.bf16.msra.mxu0 %v372
  %516 = vmatprep.subr.bf16.mxu0 0
  %517 = vmatpush2.bf16.msra.mxu0 %v387
  %518 = vmatprep.subr.bf16.mxu0 0
  %519 = vmatpush2.bf16.msra.mxu0 %v386
  %520 = vmatprep.subr.bf16.mxu0 0
  %521 = vmatpush2.bf16.msra.mxu0 %v385
  %522 = vmatprep.subr.bf16.mxu0 0
  %523 = vmatpush2.bf16.msra.mxu0 %v384
  %524 = vmatprep.subr.bf16.mxu0 0
  %525 = vmatpush2.bf16.msra.mxu0 %v383
  %526 = vmatprep.subr.bf16.mxu0 0
  %527 = vmatpush2.bf16.msra.mxu0 %v382
  %528 = vmatprep.subr.bf16.mxu0 0
  %529 = vmatpush2.bf16.msra.mxu0 %v381
  %530 = vmatprep.subr.bf16.mxu0 0
  %531 = vmatpush2.bf16.msra.mxu0 %v380
  %532 = vmatprep.mubr.bf16.mxu0 %v146
  %533 = vmatmul.mubr.bf16.gmra.mxu0 %v145
  %v534 = vpop.f32.mrf.mxu0
  %v535 = vadd.f32 %v495, %v534
  %v536 = vpop.f32.mrf.mxu0
  %v537 = vpop.f32.mrf.mxu0
  %v538 = vpop.f32.mrf.mxu0
  %539 = vdwg.mxu0
  %540 = vmatprep.subr.bf16.mxu0 0
  %541 = vmatpush1.bf16.msra.mxu0 %v395
  %542 = vmatprep.subr.bf16.mxu0 0
  %543 = vmatpush1.bf16.msra.mxu0 %v394
  %544 = vmatprep.subr.bf16.mxu0 0
  %545 = vmatpush1.bf16.msra.mxu0 %v393
  %546 = vmatprep.subr.bf16.mxu0 0
  %547 = vmatpush1.bf16.msra.mxu0 %v392
  %548 = vmatprep.subr.bf16.mxu0 0
  %549 = vmatpush1.bf16.msra.mxu0 %v391
  %550 = vmatprep.subr.bf16.mxu0 0
  %551 = vmatpush1.bf16.msra.mxu0 %v390
  %552 = vmatprep.subr.bf16.mxu0 0
  %553 = vmatpush1.bf16.msra.mxu0 %v389
  %554 = vmatprep.subr.bf16.mxu0 0
  %555 = vmatpush1.bf16.msra.mxu0 %v388
  %556 = vmatprep.subr.bf16.mxu0 0
  %557 = vmatpush2.bf16.msra.mxu0 %v403
  %558 = vmatprep.subr.bf16.mxu0 0
  %559 = vmatpush2.bf16.msra.mxu0 %v402
  %560 = vmatprep.subr.bf16.mxu0 0
  %561 = vmatpush2.bf16.msra.mxu0 %v401
  %562 = vmatprep.subr.bf16.mxu0 0
  %563 = vmatpush2.bf16.msra.mxu0 %v400
  %564 = vmatprep.subr.bf16.mxu0 0
  %565 = vmatpush2.bf16.msra.mxu0 %v399
  %566 = vmatprep.subr.bf16.mxu0 0
  %567 = vmatpush2.bf16.msra.mxu0 %v398
  %568 = vmatprep.subr.bf16.mxu0 0
  %569 = vmatpush2.bf16.msra.mxu0 %v397
  %570 = vmatprep.subr.bf16.mxu0 0
  %571 = vmatpush2.bf16.msra.mxu0 %v396
  %572 = vmatprep.mubr.bf16.mxu0 %v148
  %573 = vmatmul.mubr.bf16.gmra.mxu0 %v147
  %v574 = vpop.f32.mrf.mxu0
  %v575 = vadd.f32 %v535, %v574
  %v576 = vpop.f32.mrf.mxu0
  %v577 = vpop.f32.mrf.mxu0
  %v578 = vpop.f32.mrf.mxu0
  %579 = vdwg.mxu0
  %580 = vmatprep.subr.bf16.mxu0 0
  %581 = vmatpush1.bf16.msra.mxu0 0
  %582 = vmatprep.subr.bf16.mxu0 0
  %583 = vmatpush1.bf16.msra.mxu0 0
  %584 = vmatprep.subr.bf16.mxu0 0
  %585 = vmatpush1.bf16.msra.mxu0 0
  %586 = vmatprep.subr.bf16.mxu0 0
  %587 = vmatpush1.bf16.msra.mxu0 0
  %588 = vmatprep.subr.bf16.mxu0 0
  %589 = vmatpush1.bf16.msra.mxu0 0
  %590 = vmatprep.subr.bf16.mxu0 0
  %591 = vmatpush1.bf16.msra.mxu0 0
  %592 = vmatprep.subr.bf16.mxu0 0
  %593 = vmatpush1.bf16.msra.mxu0 %v405
  %594 = vmatprep.subr.bf16.mxu0 0
  %595 = vmatpush1.bf16.msra.mxu0 %v404
  %596 = vmatprep.subr.bf16.mxu0 0
  %597 = vmatpush2.bf16.msra.mxu0 0
  %598 = vmatprep.subr.bf16.mxu0 0
  %599 = vmatpush2.bf16.msra.mxu0 0
  %600 = vmatprep.subr.bf16.mxu0 0
  %601 = vmatpush2.bf16.msra.mxu0 0
  %602 = vmatprep.subr.bf16.mxu0 0
  %603 = vmatpush2.bf16.msra.mxu0 0
  %604 = vmatprep.subr.bf16.mxu0 0
  %605 = vmatpush2.bf16.msra.mxu0 0
  %606 = vmatprep.subr.bf16.mxu0 0
  %607 = vmatpush2.bf16.msra.mxu0 0
  %608 = vmatprep.subr.bf16.mxu0 0
  %609 = vmatpush2.bf16.msra.mxu0 0
  %610 = vmatprep.subr.bf16.mxu0 0
  %611 = vmatpush2.bf16.msra.mxu0 0
  %612 = vmatprep.mubr.bf16.mxu0 0
  %613 = vmatmul.mubr.bf16.gmra.mxu0 %v458
  %v614 = vpop.f32.mrf.mxu0
  %v615 = vadd.f32 %v575, %v614
  %v616 = vpop.f32.mrf.mxu0
  %v617 = vpop.f32.mrf.mxu0
  %v618 = vpop.f32.mrf.mxu0
  %619 = vdwg.mxu0
  %v620 = vmax.f32 %v615, 0.0
  %v621 = vpack.c.bf16 %v620, %v620
  %v622 = vld [vmem:[%s3] sm:$0xf]
  %v623 = vld [vmem:[%s3 + $0x4] sm:$0xf]
  %v624 = vld [vmem:[%s3 + $0x8] sm:$0xf]
  %v625 = vld [vmem:[%s3 + $0xc] sm:$0xf]
  %v626 = vld [vmem:[%s3 + $0x10] sm:$0xf]
  %v627 = vld [vmem:[%s3 + $0x14] sm:$0xf]
  %v628 = vld [vmem:[%s3 + $0x18] sm:$0xf]
  %v629 = vld [vmem:[%s3 + $0x1c] sm:$0xf]
  %v630 = vld [vmem:[%s3 + $0x20] sm:$0xf]
  %v631 = vld [vmem:[%s3 + $0x24] sm:$0xf]
  %v632 = vld [vmem:[%s3 + $0x28] sm:$0xf]
  %v633 = vld [vmem:[%s3 + $0x2c] sm:$0xf]
  %v634 = vld [vmem:[%s3 + $0x30] sm:$0x3]
  %v635 = vld [vmem:[%s4] sm:$0x1]
  %v637 = vlaneseq
  %v638 = vshrl.u32 %v637, 7
  %v639 = vsub.s32 0, %v638
  %v640 = vrot.slane %v635, %v639
  %v655 = vunpack.c.l.b16 %v622
  %v656 = vunpack.c.l.b16 %v623
  %v657 = vunpack.c.l.b16 %v624
  %v658 = vunpack.c.l.b16 %v625
  %v659 = vunpack.c.l.b16 %v626
  %v660 = vunpack.c.l.b16 %v627
  %v661 = vunpack.c.l.b16 %v628
  %v662 = vunpack.c.l.b16 %v629
  %v663 = vunpack.c.l.b16 %v630
  %v664 = vunpack.c.l.b16 %v631
  %v665 = vunpack.c.l.b16 %v632
  %v666 = vunpack.c.l.b16 %v633
  %v667 = vunpack.c.l.b16 %v634
  %v668 = vpack.c.b16 %v656, %v655
  %v669 = vpack.c.b16 %v658, %v657
  %v670 = vpack.c.b16 %v660, %v659
  %v671 = vpack.c.b16 %v662, %v661
  %v672 = vpack.c.b16 %v664, %v663
  %v673 = vpack.c.b16 %v666, %v665
  %v674 = vpack.c.b16 %v667, %v667
  %vm681 = vcmask 818176
  %v683 = vsel %vm681, %v621, 0
  %vm685 = vcmask 1041408
  %v687 = vsel %vm685, %v674, 0
  %689 = vmatprep.subr.bf16.mxu0 0
  %690 = vmatpush1.bf16.msra.mxu0 0
  %691 = vmatprep.subr.bf16.mxu0 0
  %692 = vmatpush1.bf16.msra.mxu0 %v687
  %693 = vmatprep.subr.bf16.mxu0 0
  %694 = vmatpush1.bf16.msra.mxu0 %v673
  %695 = vmatprep.subr.bf16.mxu0 0
  %696 = vmatpush1.bf16.msra.mxu0 %v672
  %697 = vmatprep.subr.bf16.mxu0 0
  %698 = vmatpush1.bf16.msra.mxu0 %v671
  %699 = vmatprep.subr.bf16.mxu0 0
  %700 = vmatpush1.bf16.msra.mxu0 %v670
  %701 = vmatprep.subr.bf16.mxu0 0
  %702 = vmatpush1.bf16.msra.mxu0 %v669
  %703 = vmatprep.subr.bf16.mxu0 0
  %704 = vmatpush1.bf16.msra.mxu0 %v668
  %705 = vmatprep.subr.bf16.mxu0 0
  %706 = vmatpush2.bf16.msra.mxu0 0
  %707 = vmatprep.subr.bf16.mxu0 0
  %708 = vmatpush2.bf16.msra.mxu0 0
  %709 = vmatprep.subr.bf16.mxu0 0
  %710 = vmatpush2.bf16.msra.mxu0 0
  %711 = vmatprep.subr.bf16.mxu0 0
  %712 = vmatpush2.bf16.msra.mxu0 0
  %713 = vmatprep.subr.bf16.mxu0 0
  %714 = vmatpush2.bf16.msra.mxu0 0
  %715 = vmatprep.subr.bf16.mxu0 0
  %716 = vmatpush2.bf16.msra.mxu0 0
  %717 = vmatprep.subr.bf16.mxu0 0
  %718 = vmatpush2.bf16.msra.mxu0 0
  %719 = vmatprep.subr.bf16.mxu0 0
  %720 = vmatpush2.bf16.msra.mxu0 0
  %721 = vmatprep.mubr.bf16.mxu0 0
  %722 = vmatmul.mubr.bf16.gmra.mxu0 %v683
  %v723 = vpop.f32.mrf.mxu0
  %v724 = vadd.f32 %v640, %v723
  %v725 = vpop.f32.mrf.mxu0
  %v726 = vpop.f32.mrf.mxu0
  %v727 = vpop.f32.mrf.mxu0
  %728 = vdwg.mxu0
  %vm729 = vcmask 80896
  %v730 = vsel %vm729, %v724, -inf
  %731 = vmax.xlane.f32.xlu0 %v730
  %v732 = vpop.xlane.xlu0 %731
  %v733 = vsub.f32 %v724, %v732
  %v734 = vmul.f32 %v733, 1.442695
  %v735 = vpow.pop %v734
  %v736 = vsel %vm729, %v735, 0.0
  %737 = vadd.xlane.f32.xlu0 %v736
  %v738 = vpop.xlane.xlu0 %737
  %v739 = vrcp.pop %v738
  %v740 = vmul.f32 %v735, %v739
  %741 = vst.msk [vmem:[%s5] sm:$0xff] %vm729, %v740
  // Predicated region
  $region22: #{cnn_forward.5} parent=0 // pred_check
    _
  $region23: #{cnn_forward.5} parent=0 // pred_check_branch
    %743 = sbr.rel (0) target = $region25
  $region24: #{cnn_forward.5} parent=0 // pred_region
    _
  $region25: #{cnn_forward.5} parent=0 // pred_fallthru
    _
  // Predicated region
  $region26: #{cnn_forward.5} parent=0 // pred_check
    _
  $region27: #{cnn_forward.5} parent=0 // pred_check_branch
    %745 = sbr.rel (0) target = $region29
  $region28: #{cnn_forward.5} parent=0 // pred_region
    _
  $region29: #{cnn_forward.5} parent=0 // pred_fallthru
    _

</llo_original>
